<compile_context>
chip_gen: v5e
topology: v5e:2x2
jax: 0.10.0
libtpu: 0.0.40
codegen_flags: <defaults>
</compile_context>

<pallas_src>
import functools

import numpy as np
import jax
import jax.numpy as jnp
from jax.experimental import pallas as pl
from jax.experimental.pallas import tpu as pltpu


def _gelu_tanh(x):
    # TODO(synk): PyTorch nn.GELU() default uses the exact erf formulation;
    # the tanh approximation is used here (max abs diff ~1e-3 vs erf).
    c = 0.7978845608028654  # sqrt(2/pi)
    return 0.5 * x * (1.0 + jnp.tanh(c * (x + 0.044715 * x * x * x)))


def _photometric_kernel(x_ref, m_ref, w1_ref, b1_ref, w2_ref, b2_ref,
                        wl_ref, bl_ref, o_ref, *, shifts, hw, batch):
    compute_dtype = w1_ref.dtype       # bf16 (MXU-native) or f32

    # Fuse the batch into the lane dimension: (B, Cin, HW) -> (Cin, B*HW).
    # HW is a multiple of 128, so this concat is pure vreg lane placement.
    x = jnp.concatenate([x_ref[b] for b in range(batch)], axis=-1)

    # Pre-broadcast (Ch, N) tap masks, each loaded exactly once (no per-use
    # broadcast_in_dim, no (1, N) sublane-offset partial loads).
    masks = [m_ref[t] for t in range(9)]

    def im2col(a):
        # a: (C, N) f32 -> (9*C, N) compute_dtype; taps stacked along
        # sublanes.  Rolls use the XLU slot, 0/1-mask multiplies the VPU
        # (kept in f32 -- v5e has no bf16 VALU); cast only at the MXU
        # boundary.  The periodic mask also kills any roll that would cross
        # a batch-image boundary or wrap around.
        C = a.shape[0]
        parts = []
        for t, s in enumerate(shifts):
            if s == 0:
                parts.append(a.astype(compute_dtype))       # center tap: all-valid
            else:
                rolled = pltpu.roll(a, shift=s, axis=1)      # axis must be >= 0
                parts.append((rolled * masks[t][:C]).astype(compute_dtype))
        return jnp.concatenate(parts, axis=0)

    # Conv2d #1 (3x3 'same') with eval-mode BatchNorm folded in: one big-K
    # matmul (K = 9*Cin).  No K padding -- the MXU pads the contraction.
    h = jnp.dot(w1_ref[...], im2col(x),
                preferred_element_type=jnp.float32) + b1_ref[...]
    # Conv2d #2 (3x3 'same'): one big-K matmul (K = 9*Ch).
    h = jnp.dot(w2_ref[...], im2col(h),
                preferred_element_type=jnp.float32) + b2_ref[...]

    # GELU (f32 on VPU/EUP), then a single fused Linear over all batch
    # elements: (B*Ch, HW) @ (HW, DPAD) -> one MXU call, one unmasked
    # lane-dense store.  HW slices are 128-aligned -> pure vreg selects.
    g = _gelu_tanh(h)                                        # (Ch, B*HW) f32
    gb = jnp.concatenate([g[:, b * hw:(b + 1) * hw] for b in range(batch)],
                         axis=0).astype(compute_dtype)       # (B*Ch, HW)
    out = jnp.dot(gb, wl_ref[...],
                  preferred_element_type=jnp.float32) + bl_ref[...]
    o_ref[...] = out.astype(o_ref.dtype)


def make_tap_masks(H, W, B, Ch):
    """(9, Ch, B*H*W) 0/1 masks: mask[t, :, q] = 1 iff the 3x3 tap t at
    flattened position q stays inside its own image (bakes in 'same' zero
    padding and batch-image boundaries).  Pre-broadcast over channels."""
    HW = H * W
    N = B * HW
    q = np.arange(N)
    pos = q % HW
    y, x = pos // W, pos % W
    mats = []
    for dy in (-1, 0, 1):
        for dx in (-1, 0, 1):
            valid = (y + dy >= 0) & (y + dy < H) & (x + dx >= 0) & (x + dx < W)
            mats.append(valid.astype(np.float32))
    base = np.stack(mats)                                    # (9, N)
    return jnp.asarray(np.broadcast_to(base[:, None, :], (9, Ch, N)).copy())


def make_tap_shifts(H, W, B):
    """Static lane-roll amounts so that rolled[:, q] == x[:, q + dy*W + dx]."""
    N = B * H * W
    return tuple(int((-(dy * W + dx)) % N)
                 for dy in (-1, 0, 1) for dx in (-1, 0, 1))


def prepare_params(params, B, H, W, compute_dtype=jnp.bfloat16):
    """One-time parameter re-layout (BN fold, im2col weight layout, lane-padded
    linear weight, tap masks).  Call ONCE per model/shape, NOT per forward."""
    HW = H * W
    Ch, Cin = params["w1"].shape[0], params["w1"].shape[1]
    Dout = params["wl"].shape[0]
    DPAD = ((Dout + 127) // 128) * 128                       # lane-dense output width

    # Fold eval-mode BatchNorm into conv1 (exact for inference stats).
    eps = 1e-5
    bn_scale = params["bn_gamma"] / jnp.sqrt(params["bn_var"] + eps)
    bn_shift = params["bn_beta"] - params["bn_mean"] * bn_scale
    w1f = params["w1"] * bn_scale[:, None, None, None]
    b1f = (bn_scale * params["b1"] + bn_shift).reshape(Ch, 1).astype(jnp.float32)

    # Tap-major (tap = ky*3 + kx) layout matching the roll/mask ordering.
    w1i = jnp.transpose(w1f, (0, 2, 3, 1)).reshape(Ch, 9 * Cin).astype(compute_dtype)
    w2i = jnp.transpose(params["w2"], (0, 2, 3, 1)).reshape(Ch, 9 * Ch).astype(compute_dtype)
    b2f = params["b2"].reshape(Ch, 1).astype(jnp.float32)

    # Linear weight transposed and lane-padded to DPAD (padding columns zero).
    wlp = jnp.zeros((HW, DPAD), compute_dtype).at[:, :Dout].set(
        params["wl"].T.astype(compute_dtype))
    blp = jnp.zeros((1, DPAD), jnp.float32).at[:, :Dout].set(params["bl"])

    return {"w1": w1i, "b1": b1f, "w2": w2i, "b2": b2f,
            "wl": wlp, "bl": blp, "masks": make_tap_masks(H, W, B, Ch)}


@functools.partial(jax.jit, static_argnames=("dout",))
def photometric_forward(feat_nchw, prepped, dout):
    B, Cin, H, W = feat_nchw.shape
    HW = H * W
    N = B * HW
    Ch = prepped["w1"].shape[0]
    DPAD = prepped["wl"].shape[1]

    # Free (bitcast) reshape only; batch->lane fusion happens inside the
    # kernel, so no separate host-side transpose launch on the hot path.
    x = feat_nchw.reshape(B, Cin, HW).astype(jnp.float32)

    shifts = make_tap_shifts(H, W, B)
    kernel = functools.partial(_photometric_kernel, shifts=shifts, hw=HW, batch=B)

    operands = (x, prepped["masks"], prepped["w1"], prepped["b1"],
                prepped["w2"], prepped["b2"], prepped["wl"], prepped["bl"])
    flops = (2 * N * Ch * (9 * Cin) + 2 * N * Ch * (9 * Ch)
             + 2 * (B * Ch) * HW * DPAD + 12 * Ch * N)
    bytes_accessed = (sum(int(np.prod(a.shape)) * a.dtype.itemsize for a in operands)
                      + B * Ch * DPAD * 4)

    # Everything (<1 MiB) fits VMEM on v5e/v6e/v7x -> single invocation, no
    # grid (batch lives on lanes; at N=512 per-grid-step overhead would exceed
    # the compute).  TODO(synk): if N = B*Hf*Wf grows past a few thousand
    # lanes, add a 1-D "parallel" lane grid (chunks >= 1024, multiples of 128)
    # so v7x's two TensorCores share the work and the conv2 im2col slab stays
    # under v7x's smaller VMEM.
    out = pl.pallas_call(
        kernel,
        out_shape=jax.ShapeDtypeStruct((B * Ch, DPAD), jnp.float32),
        in_specs=[pl.BlockSpec(memory_space=pltpu.MemorySpace.VMEM)] * len(operands),
        out_specs=pl.BlockSpec(memory_space=pltpu.MemorySpace.VMEM),
        cost_estimate=pl.CostEstimate(flops=flops, transcendentals=Ch * N,
                                      bytes_accessed=bytes_accessed),
    )(*operands)

    return out.reshape(B, Ch, DPAD)[:, :, :dout]


def reference_forward(feat_nchw, params):
    """Pure-JAX reference matching the PyTorch forward (BN in inference mode)."""
    x = feat_nchw.astype(jnp.float32)

    def conv(inp, w, b):
        out = jax.lax.conv_general_dilated(
            inp, w, window_strides=(1, 1), padding="SAME",
            dimension_numbers=("NCHW", "OIHW", "NCHW"))
        return out + b.reshape(1, -1, 1, 1)

    h = conv(x, params["w1"], params["b1"])
    eps = 1e-5
    scale = params["bn_gamma"] / jnp.sqrt(params["bn_var"] + eps)
    shift = params["bn_beta"] - params["bn_mean"] * scale
    h = h * scale.reshape(1, -1, 1, 1) + shift.reshape(1, -1, 1, 1)
    h = conv(h, params["w2"], params["b2"])
    B, C, H, W = h.shape
    h = h.reshape(B, C, H * W)
    g = _gelu_tanh(h)
    return jnp.dot(g, params["wl"].T) + params["bl"]


if __name__ == "__main__":
    # Small shapes consistent with the module:
    #   timm_model_out_channel = 8, feature map 16x16 => timm_model_out_feature = 256
    #   hidden_out_channel = 32, hidden_out_dim = 28
    B, Cin, H, W = 2, 8, 16, 16
    Ch, Dout = 32, 28
    HW = H * W

    key = jax.random.PRNGKey(0)
    keys = jax.random.split(key, 11)
    params = {
        "w1": 0.1 * jax.random.normal(keys[0], (Ch, Cin, 3, 3), jnp.float32),
        "b1": 0.1 * jax.random.normal(keys[1], (Ch,), jnp.float32),
        "bn_gamma": 1.0 + 0.1 * jax.random.normal(keys[2], (Ch,), jnp.float32),
        "bn_beta": 0.1 * jax.random.normal(keys[3], (Ch,), jnp.float32),
        "bn_mean": 0.1 * jax.random.normal(keys[4], (Ch,), jnp.float32),
        "bn_var": jax.random.uniform(keys[5], (Ch,), jnp.float32, 0.5, 1.5),
        "w2": 0.05 * jax.random.normal(keys[6], (Ch, Ch, 3, 3), jnp.float32),
        "b2": 0.1 * jax.random.normal(keys[7], (Ch,), jnp.float32),
        "wl": jax.random.normal(keys[8], (Dout, HW), jnp.float32) / np.sqrt(HW),
        "bl": 0.1 * jax.random.normal(keys[9], (Dout,), jnp.float32),
    }
    # Input to the kernel = output feature map of the timm backbone (NCHW).
    feat = jax.random.normal(keys[10], (B, Cin, H, W), jnp.float32)

    ref = reference_forward(feat, params)

    # f32 MXU path: tight check of the roll/mask im2col + BN-fold math.
    prepped_f32 = prepare_params(params, B, H, W, compute_dtype=jnp.float32)
    out_f32 = jax.block_until_ready(photometric_forward(feat, prepped_f32, dout=Dout))
    assert out_f32.shape == (B, Ch, Dout) and out_f32.dtype == jnp.float32
    np.testing.assert_allclose(np.asarray(out_f32), np.asarray(ref),
                               atol=1e-4, rtol=1e-4)

    # bf16 MXU-input path (f32 accumulation): the production configuration on
    # v5e/v6e/v7x.  Tolerance widened to cover bf16 input quantization.
    prepped_bf16 = prepare_params(params, B, H, W, compute_dtype=jnp.bfloat16)
    out_bf16 = jax.block_until_ready(photometric_forward(feat, prepped_bf16, dout=Dout))
    assert out_bf16.shape == (B, Ch, Dout) and out_bf16.dtype == jnp.float32
    np.testing.assert_allclose(np.asarray(out_bf16), np.asarray(ref),
                               atol=5e-2, rtol=5e-2)

    print("KERNEL_OK")
</pallas_src>

<mosaic_0001>
module attributes {stable_mosaic.version = 11 : i64} {
  func.func @_photometric_kernel(%arg0: memref<2x8x256xf32, #tpu.memory_space<vmem>>, %arg1: memref<9x32x512xf32, #tpu.memory_space<vmem>>, %arg2: memref<32x72xf32, #tpu.memory_space<vmem>>, %arg3: memref<32x1xf32, #tpu.memory_space<vmem>>, %arg4: memref<32x288xf32, #tpu.memory_space<vmem>>, %arg5: memref<32x1xf32, #tpu.memory_space<vmem>>, %arg6: memref<256x128xf32, #tpu.memory_space<vmem>>, %arg7: memref<1x128xf32, #tpu.memory_space<vmem>>, %arg8: memref<64x128xf32, #tpu.memory_space<vmem>>) attributes {dimension_semantics = [], scalar_prefetch = 0 : i64, scratch_operands = 0 : i64, tpu.core_type = #tpu.core_type<tc>} {
    %c0 = arith.constant 0 : index
    %c0_0 = arith.constant 0 : index
    %c0_1 = arith.constant 0 : index
    %0 = vector.load %arg0[%c0, %c0_0, %c0_1] : memref<2x8x256xf32, #tpu.memory_space<vmem>>, vector<1x8x256xf32>
    %1 = vector.shape_cast %0 : vector<1x8x256xf32> to vector<8x256xf32>
    %c1 = arith.constant 1 : index
    %c0_2 = arith.constant 0 : index
    %c0_3 = arith.constant 0 : index
    %2 = vector.load %arg0[%c1, %c0_2, %c0_3] : memref<2x8x256xf32, #tpu.memory_space<vmem>>, vector<1x8x256xf32>
    %3 = vector.shape_cast %2 : vector<1x8x256xf32> to vector<8x256xf32>
    %4 = tpu.concatenate %1, %3 in 1 : vector<8x256xf32>, vector<8x256xf32> -> vector<8x512xf32>
    %c0_4 = arith.constant 0 : index
    %c0_5 = arith.constant 0 : index
    %c0_6 = arith.constant 0 : index
    %5 = vector.load %arg1[%c0_4, %c0_5, %c0_6] : memref<9x32x512xf32, #tpu.memory_space<vmem>>, vector<1x32x512xf32>
    %6 = vector.shape_cast %5 : vector<1x32x512xf32> to vector<32x512xf32>
    %c1_7 = arith.constant 1 : index
    %c0_8 = arith.constant 0 : index
    %c0_9 = arith.constant 0 : index
    %7 = vector.load %arg1[%c1_7, %c0_8, %c0_9] : memref<9x32x512xf32, #tpu.memory_space<vmem>>, vector<1x32x512xf32>
    %8 = vector.shape_cast %7 : vector<1x32x512xf32> to vector<32x512xf32>
    %c2 = arith.constant 2 : index
    %c0_10 = arith.constant 0 : index
    %c0_11 = arith.constant 0 : index
    %9 = vector.load %arg1[%c2, %c0_10, %c0_11] : memref<9x32x512xf32, #tpu.memory_space<vmem>>, vector<1x32x512xf32>
    %10 = vector.shape_cast %9 : vector<1x32x512xf32> to vector<32x512xf32>
    %c3 = arith.constant 3 : index
    %c0_12 = arith.constant 0 : index
    %c0_13 = arith.constant 0 : index
    %11 = vector.load %arg1[%c3, %c0_12, %c0_13] : memref<9x32x512xf32, #tpu.memory_space<vmem>>, vector<1x32x512xf32>
    %12 = vector.shape_cast %11 : vector<1x32x512xf32> to vector<32x512xf32>
    %c5 = arith.constant 5 : index
    %c0_14 = arith.constant 0 : index
    %c0_15 = arith.constant 0 : index
    %13 = vector.load %arg1[%c5, %c0_14, %c0_15] : memref<9x32x512xf32, #tpu.memory_space<vmem>>, vector<1x32x512xf32>
    %14 = vector.shape_cast %13 : vector<1x32x512xf32> to vector<32x512xf32>
    %c6 = arith.constant 6 : index
    %c0_16 = arith.constant 0 : index
    %c0_17 = arith.constant 0 : index
    %15 = vector.load %arg1[%c6, %c0_16, %c0_17] : memref<9x32x512xf32, #tpu.memory_space<vmem>>, vector<1x32x512xf32>
    %16 = vector.shape_cast %15 : vector<1x32x512xf32> to vector<32x512xf32>
    %c7 = arith.constant 7 : index
    %c0_18 = arith.constant 0 : index
    %c0_19 = arith.constant 0 : index
    %17 = vector.load %arg1[%c7, %c0_18, %c0_19] : memref<9x32x512xf32, #tpu.memory_space<vmem>>, vector<1x32x512xf32>
    %18 = vector.shape_cast %17 : vector<1x32x512xf32> to vector<32x512xf32>
    %c8 = arith.constant 8 : index
    %c0_20 = arith.constant 0 : index
    %c0_21 = arith.constant 0 : index
    %19 = vector.load %arg1[%c8, %c0_20, %c0_21] : memref<9x32x512xf32, #tpu.memory_space<vmem>>, vector<1x32x512xf32>
    %20 = vector.shape_cast %19 : vector<1x32x512xf32> to vector<32x512xf32>
    %c0_22 = arith.constant 0 : index
    %c0_23 = arith.constant 0 : index
    %21 = vector.load %arg2[%c0_22, %c0_23] : memref<32x72xf32, #tpu.memory_space<vmem>>, vector<32x72xf32>
    %c17_i32 = arith.constant 17 : i32
    %22 = tpu.dynamic_rotate %4 by %c17_i32 dim 1 : vector<8x512xf32>, i32 -> vector<8x512xf32>
    %23 = vector.extract_strided_slice %6 {offsets = [0, 0], sizes = [8, 512], strides = [1, 1]} : vector<32x512xf32> to vector<8x512xf32>
    %24 = arith.mulf %22, %23 : vector<8x512xf32>
    %c16_i32 = arith.constant 16 : i32
    %25 = tpu.dynamic_rotate %4 by %c16_i32 dim 1 : vector<8x512xf32>, i32 -> vector<8x512xf32>
    %26 = vector.extract_strided_slice %8 {offsets = [0, 0], sizes = [8, 512], strides = [1, 1]} : vector<32x512xf32> to vector<8x512xf32>
    %27 = arith.mulf %25, %26 : vector<8x512xf32>
    %c15_i32 = arith.constant 15 : i32
    %28 = tpu.dynamic_rotate %4 by %c15_i32 dim 1 : vector<8x512xf32>, i32 -> vector<8x512xf32>
    %29 = vector.extract_strided_slice %10 {offsets = [0, 0], sizes = [8, 512], strides = [1, 1]} : vector<32x512xf32> to vector<8x512xf32>
    %30 = arith.mulf %28, %29 : vector<8x512xf32>
    %c1_i32 = arith.constant 1 : i32
    %31 = tpu.dynamic_rotate %4 by %c1_i32 dim 1 : vector<8x512xf32>, i32 -> vector<8x512xf32>
    %32 = vector.extract_strided_slice %12 {offsets = [0, 0], sizes = [8, 512], strides = [1, 1]} : vector<32x512xf32> to vector<8x512xf32>
    %33 = arith.mulf %31, %32 : vector<8x512xf32>
    %c511_i32 = arith.constant 511 : i32
    %34 = tpu.dynamic_rotate %4 by %c511_i32 dim 1 : vector<8x512xf32>, i32 -> vector<8x512xf32>
    %35 = vector.extract_strided_slice %14 {offsets = [0, 0], sizes = [8, 512], strides = [1, 1]} : vector<32x512xf32> to vector<8x512xf32>
    %36 = arith.mulf %34, %35 : vector<8x512xf32>
    %c497_i32 = arith.constant 497 : i32
    %37 = tpu.dynamic_rotate %4 by %c497_i32 dim 1 : vector<8x512xf32>, i32 -> vector<8x512xf32>
    %38 = vector.extract_strided_slice %16 {offsets = [0, 0], sizes = [8, 512], strides = [1, 1]} : vector<32x512xf32> to vector<8x512xf32>
    %39 = arith.mulf %37, %38 : vector<8x512xf32>
    %c496_i32 = arith.constant 496 : i32
    %40 = tpu.dynamic_rotate %4 by %c496_i32 dim 1 : vector<8x512xf32>, i32 -> vector<8x512xf32>
    %41 = vector.extract_strided_slice %18 {offsets = [0, 0], sizes = [8, 512], strides = [1, 1]} : vector<32x512xf32> to vector<8x512xf32>
    %42 = arith.mulf %40, %41 : vector<8x512xf32>
    %c495_i32 = arith.constant 495 : i32
    %43 = tpu.dynamic_rotate %4 by %c495_i32 dim 1 : vector<8x512xf32>, i32 -> vector<8x512xf32>
    %44 = vector.extract_strided_slice %20 {offsets = [0, 0], sizes = [8, 512], strides = [1, 1]} : vector<32x512xf32> to vector<8x512xf32>
    %45 = arith.mulf %43, %44 : vector<8x512xf32>
    %46 = tpu.concatenate %24, %27, %30, %33, %4, %36, %39, %42, %45 in 0 : vector<8x512xf32>, vector<8x512xf32>, vector<8x512xf32>, vector<8x512xf32>, vector<8x512xf32>, vector<8x512xf32>, vector<8x512xf32>, vector<8x512xf32>, vector<8x512xf32> -> vector<72x512xf32>
    %cst = arith.constant dense<0.000000e+00> : vector<32x512xf32>
    %47 = tpu.matmul %21, %46, %cst {dimension_numbers = #tpu.dot_dimension_numbers<[1], [0], [0], [1], [0, 0, 1, 1], [], []>} : vector<32x72xf32>, vector<72x512xf32>, vector<32x512xf32> -> vector<32x512xf32>
    %c0_24 = arith.constant 0 : index
    %c0_25 = arith.constant 0 : index
    %48 = vector.load %arg3[%c0_24, %c0_25] : memref<32x1xf32, #tpu.memory_space<vmem>>, vector<32x1xf32>
    %49 = vector.broadcast %48 : vector<32x1xf32> to vector<32x512xf32>
    %50 = arith.addf %47, %49 : vector<32x512xf32>
    %c0_26 = arith.constant 0 : index
    %c0_27 = arith.constant 0 : index
    %51 = vector.load %arg4[%c0_26, %c0_27] : memref<32x288xf32, #tpu.memory_space<vmem>>, vector<32x288xf32>
    %c17_i32_28 = arith.constant 17 : i32
    %52 = tpu.dynamic_rotate %50 by %c17_i32_28 dim 1 : vector<32x512xf32>, i32 -> vector<32x512xf32>
    %53 = arith.mulf %52, %6 : vector<32x512xf32>
    %c16_i32_29 = arith.constant 16 : i32
    %54 = tpu.dynamic_rotate %50 by %c16_i32_29 dim 1 : vector<32x512xf32>, i32 -> vector<32x512xf32>
    %55 = arith.mulf %54, %8 : vector<32x512xf32>
    %c15_i32_30 = arith.constant 15 : i32
    %56 = tpu.dynamic_rotate %50 by %c15_i32_30 dim 1 : vector<32x512xf32>, i32 -> vector<32x512xf32>
    %57 = arith.mulf %56, %10 : vector<32x512xf32>
    %c1_i32_31 = arith.constant 1 : i32
    %58 = tpu.dynamic_rotate %50 by %c1_i32_31 dim 1 : vector<32x512xf32>, i32 -> vector<32x512xf32>
    %59 = arith.mulf %58, %12 : vector<32x512xf32>
    %c511_i32_32 = arith.constant 511 : i32
    %60 = tpu.dynamic_rotate %50 by %c511_i32_32 dim 1 : vector<32x512xf32>, i32 -> vector<32x512xf32>
    %61 = arith.mulf %60, %14 : vector<32x512xf32>
    %c497_i32_33 = arith.constant 497 : i32
    %62 = tpu.dynamic_rotate %50 by %c497_i32_33 dim 1 : vector<32x512xf32>, i32 -> vector<32x512xf32>
    %63 = arith.mulf %62, %16 : vector<32x512xf32>
    %c496_i32_34 = arith.constant 496 : i32
    %64 = tpu.dynamic_rotate %50 by %c496_i32_34 dim 1 : vector<32x512xf32>, i32 -> vector<32x512xf32>
    %65 = arith.mulf %64, %18 : vector<32x512xf32>
    %c495_i32_35 = arith.constant 495 : i32
    %66 = tpu.dynamic_rotate %50 by %c495_i32_35 dim 1 : vector<32x512xf32>, i32 -> vector<32x512xf32>
    %67 = arith.mulf %66, %20 : vector<32x512xf32>
    %68 = tpu.concatenate %53, %55, %57, %59, %50, %61, %63, %65, %67 in 0 : vector<32x512xf32>, vector<32x512xf32>, vector<32x512xf32>, vector<32x512xf32>, vector<32x512xf32>, vector<32x512xf32>, vector<32x512xf32>, vector<32x512xf32>, vector<32x512xf32> -> vector<288x512xf32>
    %cst_36 = arith.constant dense<0.000000e+00> : vector<32x512xf32>
    %69 = tpu.matmul %51, %68, %cst_36 {dimension_numbers = #tpu.dot_dimension_numbers<[1], [0], [0], [1], [0, 0, 1, 1], [], []>} : vector<32x288xf32>, vector<288x512xf32>, vector<32x512xf32> -> vector<32x512xf32>
    %c0_37 = arith.constant 0 : index
    %c0_38 = arith.constant 0 : index
    %70 = vector.load %arg5[%c0_37, %c0_38] : memref<32x1xf32, #tpu.memory_space<vmem>>, vector<32x1xf32>
    %71 = vector.broadcast %70 : vector<32x1xf32> to vector<32x512xf32>
    %72 = arith.addf %69, %71 : vector<32x512xf32>
    %cst_39 = arith.constant 5.000000e-01 : f32
    %73 = vector.broadcast %cst_39 : f32 to vector<32x512xf32>
    %74 = arith.mulf %73, %72 : vector<32x512xf32>
    %cst_40 = arith.constant 4.471500e-02 : f32
    %75 = vector.broadcast %cst_40 : f32 to vector<32x512xf32>
    %76 = arith.mulf %75, %72 : vector<32x512xf32>
    %77 = arith.mulf %76, %72 : vector<32x512xf32>
    %78 = arith.mulf %77, %72 : vector<32x512xf32>
    %79 = arith.addf %72, %78 : vector<32x512xf32>
    %cst_41 = arith.constant 0.797884583 : f32
    %80 = vector.broadcast %cst_41 : f32 to vector<32x512xf32>
    %81 = arith.mulf %80, %79 : vector<32x512xf32>
    %82 = math.tanh %81 : vector<32x512xf32>
    %cst_42 = arith.constant 1.000000e+00 : f32
    %83 = vector.broadcast %cst_42 : f32 to vector<32x512xf32>
    %84 = arith.addf %83, %82 : vector<32x512xf32>
    %85 = arith.mulf %74, %84 : vector<32x512xf32>
    %86 = vector.extract_strided_slice %85 {offsets = [0, 0], sizes = [32, 256], strides = [1, 1]} : vector<32x512xf32> to vector<32x256xf32>
    %87 = vector.extract_strided_slice %85 {offsets = [0, 256], sizes = [32, 256], strides = [1, 1]} : vector<32x512xf32> to vector<32x256xf32>
    %88 = tpu.concatenate %86, %87 in 0 : vector<32x256xf32>, vector<32x256xf32> -> vector<64x256xf32>
    %c0_43 = arith.constant 0 : index
    %c0_44 = arith.constant 0 : index
    %89 = vector.load %arg6[%c0_43, %c0_44] : memref<256x128xf32, #tpu.memory_space<vmem>>, vector<256x128xf32>
    %cst_45 = arith.constant dense<0.000000e+00> : vector<64x128xf32>
    %90 = tpu.matmul %88, %89, %cst_45 {dimension_numbers = #tpu.dot_dimension_numbers<[1], [0], [0], [1], [0, 0, 1, 1], [], []>} : vector<64x256xf32>, vector<256x128xf32>, vector<64x128xf32> -> vector<64x128xf32>
    %c0_46 = arith.constant 0 : index
    %c0_47 = arith.constant 0 : index
    %91 = vector.load %arg7[%c0_46, %c0_47] : memref<1x128xf32, #tpu.memory_space<vmem>>, vector<1x128xf32>
    %92 = vector.broadcast %91 : vector<1x128xf32> to vector<64x128xf32>
    %93 = arith.addf %90, %92 : vector<64x128xf32>
    %c0_48 = arith.constant 0 : index
    %c0_49 = arith.constant 0 : index
    %94 = vector.load %arg8[%c0_48, %c0_49] : memref<64x128xf32, #tpu.memory_space<vmem>>, vector<64x128xf32>
    tpu.vector_store %arg8[%c0_48, %c0_49], %93 {strides = array<i32>} : memref<64x128xf32, #tpu.memory_space<vmem>>, vector<64x128xf32>,
    return
  }
}

</mosaic_0001>

<llo_original>
// kernel: photometric_forward.1
$region0: #{photometric_forward.1}
  #allocation0 [shape = 'u32[]', space=smem, size = 0x4, offset = 0x4, fixed_abs, tag = 'smem constant byte address 0x4 - core index']
  #allocation1 [shape = 'u32[72,128]{1,0:T(1,128)}', space=vmem, size = 0x9000, scoped, tag = 'internal scratch']
  %s0 = inlined_call_operand.vmem [shape: f32[2,8,256], index: 0, kind: input, shape index: {}]
  %s1 = inlined_call_operand.hbm [shape: f32[9,32,512], index: 1, kind: input, shape index: {}]
  %s2 = inlined_call_operand.hbm [shape: f32[32,72], index: 2, kind: input, shape index: {}]
  %s3 = inlined_call_operand.vmem [shape: f32[32,1], index: 3, kind: input, shape index: {}]
  %s4 = inlined_call_operand.vmem [shape: f32[32,288], index: 4, kind: input, shape index: {}]
  %s5 = inlined_call_operand.vmem [shape: f32[32,1], index: 5, kind: input, shape index: {}]
  %s6 = inlined_call_operand.vmem [shape: f32[256,128], index: 6, kind: input, shape index: {}]
  %s7 = inlined_call_operand.vmem [shape: f32[1,128], index: 7, kind: input, shape index: {}]
  %s8 = inlined_call_operand.vmem [shape: f32[64,128], index: 8, kind: output, shape index: {}]
  %s9 = sld [smem:[#allocation0]]
  $region50: #{photometric_forward.1} parent=0
    _
  %s11 = ssub.s32 1, %s9
  %s12 = scalar_select 0, %s11, %s9
  $region1: #{photometric_forward.1} parent=0
    #allocation2 [shape = 'u8[589824]{0}', space=vmem, size = 0x90000, scoped, tag = 'input window, operand 1, single buffered']
    #allocation3 [shape = 's32[1]{0}', space=sflag, size = 0x4, scoped, tag = 'scoped memory for photometric_forward.1']
    #allocation4 [shape = 'u8[16384]{0}', space=vmem, size = 0x4000, scoped, tag = 'input window, operand 2, single buffered']
    #allocation5 [shape = 's32[1]{0}', space=sflag, size = 0x4, scoped, tag = 'scoped memory for photometric_forward.1']
    %13 = vsyncpa [#allocation3], 0
    %14 = vsyncpa [#allocation5], 0
    // Predicated region
    $region2: #{photometric_forward.1} parent=1 // pred_check
      _
    $region3: #{photometric_forward.1} parent=1 // pred_check_branch
      %16 = sbr.rel (0) target = $region5
    $region4: #{photometric_forward.1} parent=1 // pred_region
      _
    $region5: #{photometric_forward.1} parent=1 // pred_fallthru
      _
    // Predicated region
    $region6: #{photometric_forward.1} parent=1 // pred_check
      _
    $region7: #{photometric_forward.1} parent=1 // pred_check_branch
      %18 = sbr.rel (0) target = $region9
    $region8: #{photometric_forward.1} parent=1 // pred_region
      %20 = vsyncadd [#allocation3], 0
      %s21 = sshll.u32 %s1, 4
      %s22 = int_to_ptr.hbm [resolvable:$true] %s21
      %s23 = sshll.u32 [#allocation2], 4
      %s24 = int_to_ptr.vmem [resolvable:$true] %s23
      %29 = dma.hbm_to_vmem [thread:$0]  %s22, 18432, %s24, [#allocation3], 512, 512, 32
    $region9: #{photometric_forward.1} parent=1 // pred_fallthru
      _
    // Predicated region
    $region10: #{photometric_forward.1} parent=1 // pred_check
      _
    $region11: #{photometric_forward.1} parent=1 // pred_check_branch
      %31 = sbr.rel (0) target = $region13
    $region12: #{photometric_forward.1} parent=1 // pred_region
      %33 = vsyncadd [#allocation5], 0
      %s34 = sshll.u32 %s2, 4
      %s35 = int_to_ptr.hbm [resolvable:$true] %s34
      %s36 = sshll.u32 [#allocation4], 4
      %s37 = int_to_ptr.vmem [resolvable:$true] %s36
      %42 = dma.hbm_to_vmem [thread:$0]  %s35, 512, %s37, [#allocation5], 128, 128, 8
    $region13: #{photometric_forward.1} parent=1 // pred_fallthru
      _
    // Predicated region
    $region14: #{photometric_forward.1} parent=1 // pred_check
      _
    $region15: #{photometric_forward.1} parent=1 // pred_check_branch
      %44 = sbr.rel (0) target = $region17
    $region16: #{photometric_forward.1} parent=1 // pred_region
      _
    $region17: #{photometric_forward.1} parent=1 // pred_fallthru
      _
    // Predicated region
    $region18: #{photometric_forward.1} parent=1 // pred_check
      _
    $region19: #{photometric_forward.1} parent=1 // pred_check_branch
      %46 = sbr.rel (0) target = $region21
    $region20: #{photometric_forward.1} parent=1 // pred_region
      _
    $region21: #{photometric_forward.1} parent=1 // pred_fallthru
      _
    // Predicated region
    $region22: #{photometric_forward.1} parent=1 // pred_check
      _
    $region23: #{photometric_forward.1} parent=1 // pred_check_branch
      %48 = sbr.rel (0) target = $region25
    $region24: #{photometric_forward.1} parent=1 // pred_region
      _
    $region25: #{photometric_forward.1} parent=1 // pred_fallthru
      _
    // Predicated region
    $region26: #{photometric_forward.1} parent=1 // pred_check
      _
    $region27: #{photometric_forward.1} parent=1 // pred_check_branch
      %50 = sbr.rel (0) target = $region29
    $region28: #{photometric_forward.1} parent=1 // pred_region
      _
    $region29: #{photometric_forward.1} parent=1 // pred_fallthru
      _
    // Predicated region
    $region30: #{photometric_forward.1} parent=1 // pred_check
      _
    $region31: #{photometric_forward.1} parent=1 // pred_check_branch
      %52 = sbr.rel (0) target = $region33
    $region32: #{photometric_forward.1} parent=1 // pred_region
      _
    $region33: #{photometric_forward.1} parent=1 // pred_fallthru
      _
    // Predicated region
    $region34: #{photometric_forward.1} parent=1 // pred_check
      _
    $region35: #{photometric_forward.1} parent=1 // pred_check_branch
      %54 = sbr.rel (0) target = $region37
    $region36: #{photometric_forward.1} parent=1 // pred_region
      %56 = dma.done [#allocation3], 18432
    $region37: #{photometric_forward.1} parent=1 // pred_fallthru
      _
    // Predicated region
    $region38: #{photometric_forward.1} parent=1 // pred_check
      _
    $region39: #{photometric_forward.1} parent=1 // pred_check_branch
      %58 = sbr.rel (0) target = $region41
    $region40: #{photometric_forward.1} parent=1 // pred_region
      %60 = dma.done [#allocation5], 512
    $region41: #{photometric_forward.1} parent=1 // pred_fallthru
      _
    %v61 = vld [vmem:[%s0] sm:$0xff]
    %v62 = vld [vmem:[%s0 + $0x8] sm:$0xff]
    %s63 = scalar_lea.vmem %s0, 16
    %v64 = vld [vmem:[%s63] sm:$0xff]
    %v65 = vld [vmem:[%s63 + $0x8] sm:$0xff]
    %v66 = vld [vmem:[#allocation2] sm:$0xff]
    %v67 = vld [vmem:[#allocation2 + $0x8] sm:$0xff]
    %v68 = vld [vmem:[#allocation2 + $0x10] sm:$0xff]
    %v69 = vld [vmem:[#allocation2 + $0x18] sm:$0xff]
    %v70 = vld [vmem:[#allocation2 + $0x20] sm:$0xff]
    %v71 = vld [vmem:[#allocation2 + $0x28] sm:$0xff]
    %v72 = vld [vmem:[#allocation2 + $0x30] sm:$0xff]
    %v73 = vld [vmem:[#allocation2 + $0x38] sm:$0xff]
    %v74 = vld [vmem:[#allocation2 + $0x40] sm:$0xff]
    %v75 = vld [vmem:[#allocation2 + $0x48] sm:$0xff]
    %v76 = vld [vmem:[#allocation2 + $0x50] sm:$0xff]
    %v77 = vld [vmem:[#allocation2 + $0x58] sm:$0xff]
    %v78 = vld [vmem:[#allocation2 + $0x60] sm:$0xff]
    %v79 = vld [vmem:[#allocation2 + $0x68] sm:$0xff]
    %v80 = vld [vmem:[#allocation2 + $0x70] sm:$0xff]
    %v81 = vld [vmem:[#allocation2 + $0x78] sm:$0xff]
    %s82 = scalar_lea.vmem [#allocation2], 128
    %v83 = vld [vmem:[%s82] sm:$0xff]
    %v84 = vld [vmem:[%s82 + $0x8] sm:$0xff]
    %v85 = vld [vmem:[%s82 + $0x10] sm:$0xff]
    %v86 = vld [vmem:[%s82 + $0x18] sm:$0xff]
    %v87 = vld [vmem:[%s82 + $0x20] sm:$0xff]
    %v88 = vld [vmem:[%s82 + $0x28] sm:$0xff]
    %v89 = vld [vmem:[%s82 + $0x30] sm:$0xff]
    %v90 = vld [vmem:[%s82 + $0x38] sm:$0xff]
    %v91 = vld [vmem:[%s82 + $0x40] sm:$0xff]
    %v92 = vld [vmem:[%s82 + $0x48] sm:$0xff]
    %v93 = vld [vmem:[%s82 + $0x50] sm:$0xff]
    %v94 = vld [vmem:[%s82 + $0x58] sm:$0xff]
    %v95 = vld [vmem:[%s82 + $0x60] sm:$0xff]
    %v96 = vld [vmem:[%s82 + $0x68] sm:$0xff]
    %v97 = vld [vmem:[%s82 + $0x70] sm:$0xff]
    %v98 = vld [vmem:[%s82 + $0x78] sm:$0xff]
    %s99 = scalar_lea.vmem [#allocation2], 256
    %v100 = vld [vmem:[%s99] sm:$0xff]
    %v101 = vld [vmem:[%s99 + $0x8] sm:$0xff]
    %v102 = vld [vmem:[%s99 + $0x10] sm:$0xff]
    %v103 = vld [vmem:[%s99 + $0x18] sm:$0xff]
    %v104 = vld [vmem:[%s99 + $0x20] sm:$0xff]
    %v105 = vld [vmem:[%s99 + $0x28] sm:$0xff]
    %v106 = vld [vmem:[%s99 + $0x30] sm:$0xff]
    %v107 = vld [vmem:[%s99 + $0x38] sm:$0xff]
    %v108 = vld [vmem:[%s99 + $0x40] sm:$0xff]
    %v109 = vld [vmem:[%s99 + $0x48] sm:$0xff]
    %v110 = vld [vmem:[%s99 + $0x50] sm:$0xff]
    %v111 = vld [vmem:[%s99 + $0x58] sm:$0xff]
    %v112 = vld [vmem:[%s99 + $0x60] sm:$0xff]
    %v113 = vld [vmem:[%s99 + $0x68] sm:$0xff]
    %v114 = vld [vmem:[%s99 + $0x70] sm:$0xff]
    %v115 = vld [vmem:[%s99 + $0x78] sm:$0xff]
    %s116 = scalar_lea.vmem [#allocation2], 384
    %v117 = vld [vmem:[%s116] sm:$0xff]
    %v118 = vld [vmem:[%s116 + $0x8] sm:$0xff]
    %v119 = vld [vmem:[%s116 + $0x10] sm:$0xff]
    %v120 = vld [vmem:[%s116 + $0x18] sm:$0xff]
    %v121 = vld [vmem:[%s116 + $0x20] sm:$0xff]
    %v122 = vld [vmem:[%s116 + $0x28] sm:$0xff]
    %v123 = vld [vmem:[%s116 + $0x30] sm:$0xff]
    %v124 = vld [vmem:[%s116 + $0x38] sm:$0xff]
    %v125 = vld [vmem:[%s116 + $0x40] sm:$0xff]
    %v126 = vld [vmem:[%s116 + $0x48] sm:$0xff]
    %v127 = vld [vmem:[%s116 + $0x50] sm:$0xff]
    %v128 = vld [vmem:[%s116 + $0x58] sm:$0xff]
    %v129 = vld [vmem:[%s116 + $0x60] sm:$0xff]
    %v130 = vld [vmem:[%s116 + $0x68] sm:$0xff]
    %v131 = vld [vmem:[%s116 + $0x70] sm:$0xff]
    %v132 = vld [vmem:[%s116 + $0x78] sm:$0xff]
    %s133 = scalar_lea.vmem [#allocation2], 640
    %v134 = vld [vmem:[%s133] sm:$0xff]
    %v135 = vld [vmem:[%s133 + $0x8] sm:$0xff]
    %v136 = vld [vmem:[%s133 + $0x10] sm:$0xff]
    %v137 = vld [vmem:[%s133 + $0x18] sm:$0xff]
    %v138 = vld [vmem:[%s133 + $0x20] sm:$0xff]
    %v139 = vld [vmem:[%s133 + $0x28] sm:$0xff]
    %v140 = vld [vmem:[%s133 + $0x30] sm:$0xff]
    %v141 = vld [vmem:[%s133 + $0x38] sm:$0xff]
    %v142 = vld [vmem:[%s133 + $0x40] sm:$0xff]
    %v143 = vld [vmem:[%s133 + $0x48] sm:$0xff]
    %v144 = vld [vmem:[%s133 + $0x50] sm:$0xff]
    %v145 = vld [vmem:[%s133 + $0x58] sm:$0xff]
    %v146 = vld [vmem:[%s133 + $0x60] sm:$0xff]
    %v147 = vld [vmem:[%s133 + $0x68] sm:$0xff]
    %v148 = vld [vmem:[%s133 + $0x70] sm:$0xff]
    %v149 = vld [vmem:[%s133 + $0x78] sm:$0xff]
    %s150 = scalar_lea.vmem [#allocation2], 768
    %v151 = vld [vmem:[%s150] sm:$0xff]
    %v152 = vld [vmem:[%s150 + $0x8] sm:$0xff]
    %v153 = vld [vmem:[%s150 + $0x10] sm:$0xff]
    %v154 = vld [vmem:[%s150 + $0x18] sm:$0xff]
    %v155 = vld [vmem:[%s150 + $0x20] sm:$0xff]
    %v156 = vld [vmem:[%s150 + $0x28] sm:$0xff]
    %v157 = vld [vmem:[%s150 + $0x30] sm:$0xff]
    %v158 = vld [vmem:[%s150 + $0x38] sm:$0xff]
    %v159 = vld [vmem:[%s150 + $0x40] sm:$0xff]
    %v160 = vld [vmem:[%s150 + $0x48] sm:$0xff]
    %v161 = vld [vmem:[%s150 + $0x50] sm:$0xff]
    %v162 = vld [vmem:[%s150 + $0x58] sm:$0xff]
    %v163 = vld [vmem:[%s150 + $0x60] sm:$0xff]
    %v164 = vld [vmem:[%s150 + $0x68] sm:$0xff]
    %v165 = vld [vmem:[%s150 + $0x70] sm:$0xff]
    %v166 = vld [vmem:[%s150 + $0x78] sm:$0xff]
    %s167 = scalar_lea.vmem [#allocation2], 896
    %v168 = vld [vmem:[%s167] sm:$0xff]
    %v169 = vld [vmem:[%s167 + $0x8] sm:$0xff]
    %v170 = vld [vmem:[%s167 + $0x10] sm:$0xff]
    %v171 = vld [vmem:[%s167 + $0x18] sm:$0xff]
    %v172 = vld [vmem:[%s167 + $0x20] sm:$0xff]
    %v173 = vld [vmem:[%s167 + $0x28] sm:$0xff]
    %v174 = vld [vmem:[%s167 + $0x30] sm:$0xff]
    %v175 = vld [vmem:[%s167 + $0x38] sm:$0xff]
    %v176 = vld [vmem:[%s167 + $0x40] sm:$0xff]
    %v177 = vld [vmem:[%s167 + $0x48] sm:$0xff]
    %v178 = vld [vmem:[%s167 + $0x50] sm:$0xff]
    %v179 = vld [vmem:[%s167 + $0x58] sm:$0xff]
    %v180 = vld [vmem:[%s167 + $0x60] sm:$0xff]
    %v181 = vld [vmem:[%s167 + $0x68] sm:$0xff]
    %v182 = vld [vmem:[%s167 + $0x70] sm:$0xff]
    %v183 = vld [vmem:[%s167 + $0x78] sm:$0xff]
    %s184 = scalar_lea.vmem [#allocation2], 1024
    %v185 = vld [vmem:[%s184] sm:$0xff]
    %v186 = vld [vmem:[%s184 + $0x8] sm:$0xff]
    %v187 = vld [vmem:[%s184 + $0x10] sm:$0xff]
    %v188 = vld [vmem:[%s184 + $0x18] sm:$0xff]
    %v189 = vld [vmem:[%s184 + $0x20] sm:$0xff]
    %v190 = vld [vmem:[%s184 + $0x28] sm:$0xff]
    %v191 = vld [vmem:[%s184 + $0x30] sm:$0xff]
    %v192 = vld [vmem:[%s184 + $0x38] sm:$0xff]
    %v193 = vld [vmem:[%s184 + $0x40] sm:$0xff]
    %v194 = vld [vmem:[%s184 + $0x48] sm:$0xff]
    %v195 = vld [vmem:[%s184 + $0x50] sm:$0xff]
    %v196 = vld [vmem:[%s184 + $0x58] sm:$0xff]
    %v197 = vld [vmem:[%s184 + $0x60] sm:$0xff]
    %v198 = vld [vmem:[%s184 + $0x68] sm:$0xff]
    %v199 = vld [vmem:[%s184 + $0x70] sm:$0xff]
    %v200 = vld [vmem:[%s184 + $0x78] sm:$0xff]
    %v201 = vld [vmem:[#allocation4] sm:$0xff]
    %v202 = vld [vmem:[#allocation4 + $0x8] sm:$0xff]
    %v203 = vld [vmem:[#allocation4 + $0x10] sm:$0xff]
    %v204 = vld [vmem:[#allocation4 + $0x18] sm:$0xff]
    %205 = vrot.lane.b32.xlu0 %v61, 17
    %v206 = vpop.permute.xlu0 %205
    %207 = vrot.lane.b32.xlu0 %v62, 17
    %v208 = vpop.permute.xlu0 %207
    %209 = vrot.lane.b32.xlu0 %v64, 17
    %v210 = vpop.permute.xlu0 %209
    %211 = vrot.lane.b32.xlu0 %v65, 17
    %v212 = vpop.permute.xlu0 %211
    %v213 = vlaneseq
    %v214 = vand.u32 %v213, 127
    %vm215 = vcmp.lt.s32.totalorder %v214, 17
    %v216 = vsel %vm215, %v210, %v212
    %v217 = vsel %vm215, %v208, %v210
    %v218 = vsel %vm215, %v206, %v208
    %v219 = vsel %vm215, %v212, %v206
    %v220 = vmul.f32 %v219, %v66
    %v221 = vmul.f32 %v218, %v67
    %v222 = vmul.f32 %v217, %v68
    %v223 = vmul.f32 %v216, %v69
    %224 = vrot.lane.b32.xlu0 %v61, 16
    %v225 = vpop.permute.xlu0 %224
    %226 = vrot.lane.b32.xlu0 %v62, 16
    %v227 = vpop.permute.xlu0 %226
    %228 = vrot.lane.b32.xlu0 %v64, 16
    %v229 = vpop.permute.xlu0 %228
    %230 = vrot.lane.b32.xlu0 %v65, 16
    %v231 = vpop.permute.xlu0 %230
    %vm232 = vcmp.lt.s32.totalorder %v214, 16
    %v233 = vsel %vm232, %v229, %v231
    %v234 = vsel %vm232, %v227, %v229
    %v235 = vsel %vm232, %v225, %v227
    %v236 = vsel %vm232, %v231, %v225
    %v237 = vmul.f32 %v236, %v83
    %v238 = vmul.f32 %v235, %v84
    %v239 = vmul.f32 %v234, %v85
    %v240 = vmul.f32 %v233, %v86
    %241 = vrot.lane.b32.xlu0 %v61, 15
    %v242 = vpop.permute.xlu0 %241
    %243 = vrot.lane.b32.xlu0 %v62, 15
    %v244 = vpop.permute.xlu0 %243
    %245 = vrot.lane.b32.xlu0 %v64, 15
    %v246 = vpop.permute.xlu0 %245
    %247 = vrot.lane.b32.xlu0 %v65, 15
    %v248 = vpop.permute.xlu0 %247
    %vm249 = vcmp.lt.s32.totalorder %v214, 15
    %v250 = vsel %vm249, %v246, %v248
    %v251 = vsel %vm249, %v244, %v246
    %v252 = vsel %vm249, %v242, %v244
    %v253 = vsel %vm249, %v248, %v242
    %v254 = vmul.f32 %v253, %v100
    %v255 = vmul.f32 %v252, %v101
    %v256 = vmul.f32 %v251, %v102
    %v257 = vmul.f32 %v250, %v103
    %258 = vrot.lane.b32.xlu0 %v61, 1
    %v259 = vpop.permute.xlu0 %258
    %260 = vrot.lane.b32.xlu0 %v62, 1
    %v261 = vpop.permute.xlu0 %260
    %262 = vrot.lane.b32.xlu0 %v64, 1
    %v263 = vpop.permute.xlu0 %262
    %264 = vrot.lane.b32.xlu0 %v65, 1
    %v265 = vpop.permute.xlu0 %264
    %vm266 = vcmp.lt.s32.totalorder %v214, 1
    %v267 = vsel %vm266, %v263, %v265
    %v268 = vsel %vm266, %v261, %v263
    %v269 = vsel %vm266, %v259, %v261
    %v270 = vsel %vm266, %v265, %v259
    %v271 = vmul.f32 %v270, %v117
    %v272 = vmul.f32 %v269, %v118
    %v273 = vmul.f32 %v268, %v119
    %v274 = vmul.f32 %v267, %v120
    %275 = vrot.lane.b32.xlu0 %v61, 127
    %v276 = vpop.permute.xlu0 %275
    %277 = vrot.lane.b32.xlu0 %v62, 127
    %v278 = vpop.permute.xlu0 %277
    %279 = vrot.lane.b32.xlu0 %v64, 127
    %v280 = vpop.permute.xlu0 %279
    %281 = vrot.lane.b32.xlu0 %v65, 127
    %v282 = vpop.permute.xlu0 %281
    %vm283 = vcmp.lt.s32.totalorder %v214, 127
    %v284 = vsel %vm283, %v280, %v282
    %v285 = vsel %vm283, %v278, %v280
    %v286 = vsel %vm283, %v276, %v278
    %v287 = vsel %vm283, %v282, %v276
    %v288 = vmul.f32 %v286, %v134
    %v289 = vmul.f32 %v285, %v135
    %v290 = vmul.f32 %v284, %v136
    %v291 = vmul.f32 %v287, %v137
    %292 = vrot.lane.b32.xlu0 %v61, 113
    %v293 = vpop.permute.xlu0 %292
    %294 = vrot.lane.b32.xlu0 %v62, 113
    %v295 = vpop.permute.xlu0 %294
    %296 = vrot.lane.b32.xlu0 %v64, 113
    %v297 = vpop.permute.xlu0 %296
    %298 = vrot.lane.b32.xlu0 %v65, 113
    %v299 = vpop.permute.xlu0 %298
    %vm300 = vcmp.lt.s32.totalorder %v214, 113
    %v301 = vsel %vm300, %v297, %v299
    %v302 = vsel %vm300, %v295, %v297
    %v303 = vsel %vm300, %v293, %v295
    %v304 = vsel %vm300, %v299, %v293
    %v305 = vmul.f32 %v303, %v151
    %v306 = vmul.f32 %v302, %v152
    %v307 = vmul.f32 %v301, %v153
    %v308 = vmul.f32 %v304, %v154
    %309 = vrot.lane.b32.xlu0 %v61, 112
    %v310 = vpop.permute.xlu0 %309
    %311 = vrot.lane.b32.xlu0 %v62, 112
    %v312 = vpop.permute.xlu0 %311
    %313 = vrot.lane.b32.xlu0 %v64, 112
    %v314 = vpop.permute.xlu0 %313
    %315 = vrot.lane.b32.xlu0 %v65, 112
    %v316 = vpop.permute.xlu0 %315
    %vm317 = vcmp.lt.s32.totalorder %v214, 112
    %v318 = vsel %vm317, %v314, %v316
    %v319 = vsel %vm317, %v312, %v314
    %v320 = vsel %vm317, %v310, %v312
    %v321 = vsel %vm317, %v316, %v310
    %v322 = vmul.f32 %v320, %v168
    %v323 = vmul.f32 %v319, %v169
    %v324 = vmul.f32 %v318, %v170
    %v325 = vmul.f32 %v321, %v171
    %326 = vrot.lane.b32.xlu0 %v61, 111
    %v327 = vpop.permute.xlu0 %326
    %328 = vrot.lane.b32.xlu0 %v62, 111
    %v329 = vpop.permute.xlu0 %328
    %330 = vrot.lane.b32.xlu0 %v64, 111
    %v331 = vpop.permute.xlu0 %330
    %332 = vrot.lane.b32.xlu0 %v65, 111
    %v333 = vpop.permute.xlu0 %332
    %vm334 = vcmp.lt.s32.totalorder %v214, 111
    %v335 = vsel %vm334, %v331, %v333
    %v336 = vsel %vm334, %v329, %v331
    %v337 = vsel %vm334, %v327, %v329
    %v338 = vsel %vm334, %v333, %v327
    %v339 = vmul.f32 %v337, %v185
    %v340 = vmul.f32 %v336, %v186
    %v341 = vmul.f32 %v335, %v187
    %v342 = vmul.f32 %v338, %v188
    %v343 = vld [vmem:[%s3] sm:$0xff]
    %v344 = vld [vmem:[%s3 + $0x8] sm:$0xff]
    %v345 = vld [vmem:[%s3 + $0x10] sm:$0xff]
    %v346 = vld [vmem:[%s3 + $0x18] sm:$0xff]
    %348 = vset.pattern.permute.xlu0 0
    %349 = vperm.xlu0 %348, %v343
    %v350 = vpop.permute.xlu0 %349
    %353 = vset.pattern.permute.xlu0 0
    %354 = vperm.xlu0 %353, %v344
    %v355 = vpop.permute.xlu0 %354
    %358 = vset.pattern.permute.xlu0 0
    %359 = vperm.xlu0 %358, %v345
    %v360 = vpop.permute.xlu0 %359
    %363 = vset.pattern.permute.xlu0 0
    %364 = vperm.xlu0 %363, %v346
    %v365 = vpop.permute.xlu0 %364
    %vm367 = vcmask 588800
    %v369 = vsel %vm367, %v201, 0
    %v372 = vsel %vm367, %v202, 0
    %v375 = vsel %vm367, %v203, 0
    %v378 = vsel %vm367, %v204, 0
    %380 = vmatpush.msra.mxu0 0.0
    %381 = vmatpush.msra.mxu0 0.0
    %382 = vmatpush.msra.mxu0 0.0
    %383 = vmatpush.msra.mxu0 0.0
    %384 = vmatpush.msra.mxu0 0.0
    %385 = vmatpush.msra.mxu0 0.0
    %386 = vmatpush.msra.mxu0 0.0
    %387 = vmatpush.msra.mxu0 %v339
    %388 = vmatpush.msra.mxu0 %v322
    %389 = vmatpush.msra.mxu0 %v305
    %390 = vmatpush.msra.mxu0 %v288
    %391 = vmatpush.msra.mxu0 %v61
    %392 = vmatpush.msra.mxu0 %v271
    %393 = vmatpush.msra.mxu0 %v254
    %394 = vmatpush.msra.mxu0 %v237
    %395 = vmatpush.msra.mxu0 %v220
    %396 = vmatmul.f32.gmra.mxu0 %v369
    %v397 = vpop.f32.mrf.mxu0
    %v398 = vadd.f32 %v350, %v397
    %399 = vmatmul.f32.gmra.mxu0 %v372
    %v400 = vpop.f32.mrf.mxu0
    %v401 = vadd.f32 %v355, %v400
    %402 = vmatmul.f32.gmra.mxu0 %v375
    %v403 = vpop.f32.mrf.mxu0
    %v404 = vadd.f32 %v360, %v403
    %405 = vmatmul.f32.gmra.mxu0 %v378
    %v406 = vpop.f32.mrf.mxu0
    %v407 = vadd.f32 %v365, %v406
    %408 = vdwg.mxu0
    %409 = vmatpush.msra.mxu0 0.0
    %410 = vmatpush.msra.mxu0 0.0
    %411 = vmatpush.msra.mxu0 0.0
    %412 = vmatpush.msra.mxu0 0.0
    %413 = vmatpush.msra.mxu0 0.0
    %414 = vmatpush.msra.mxu0 0.0
    %415 = vmatpush.msra.mxu0 0.0
    %416 = vmatpush.msra.mxu0 %v340
    %417 = vmatpush.msra.mxu0 %v323
    %418 = vmatpush.msra.mxu0 %v306
    %419 = vmatpush.msra.mxu0 %v289
    %420 = vmatpush.msra.mxu0 %v62
    %421 = vmatpush.msra.mxu0 %v272
    %422 = vmatpush.msra.mxu0 %v255
    %423 = vmatpush.msra.mxu0 %v238
    %424 = vmatpush.msra.mxu0 %v221
    %425 = vmatmul.f32.gmra.mxu0 %v369
    %v426 = vpop.f32.mrf.mxu0
    %v427 = vadd.f32 %v350, %v426
    %428 = vmatmul.f32.gmra.mxu0 %v372
    %v429 = vpop.f32.mrf.mxu0
    %v430 = vadd.f32 %v355, %v429
    %431 = vmatmul.f32.gmra.mxu0 %v375
    %v432 = vpop.f32.mrf.mxu0
    %v433 = vadd.f32 %v360, %v432
    %434 = vmatmul.f32.gmra.mxu0 %v378
    %v435 = vpop.f32.mrf.mxu0
    %v436 = vadd.f32 %v365, %v435
    %437 = vdwg.mxu0
    %438 = vmatpush.msra.mxu0 0.0
    %439 = vmatpush.msra.mxu0 0.0
    %440 = vmatpush.msra.mxu0 0.0
    %441 = vmatpush.msra.mxu0 0.0
    %442 = vmatpush.msra.mxu0 0.0
    %443 = vmatpush.msra.mxu0 0.0
    %444 = vmatpush.msra.mxu0 0.0
    %445 = vmatpush.msra.mxu0 %v341
    %446 = vmatpush.msra.mxu0 %v324
    %447 = vmatpush.msra.mxu0 %v307
    %448 = vmatpush.msra.mxu0 %v290
    %449 = vmatpush.msra.mxu0 %v64
    %450 = vmatpush.msra.mxu0 %v273
    %451 = vmatpush.msra.mxu0 %v256
    %452 = vmatpush.msra.mxu0 %v239
    %453 = vmatpush.msra.mxu0 %v222
    %454 = vmatmul.f32.gmra.mxu0 %v369
    %v455 = vpop.f32.mrf.mxu0
    %v456 = vadd.f32 %v350, %v455
    %457 = vmatmul.f32.gmra.mxu0 %v372
    %v458 = vpop.f32.mrf.mxu0
    %v459 = vadd.f32 %v355, %v458
    %460 = vmatmul.f32.gmra.mxu0 %v375
    %v461 = vpop.f32.mrf.mxu0
    %v462 = vadd.f32 %v360, %v461
    %463 = vmatmul.f32.gmra.mxu0 %v378
    %v464 = vpop.f32.mrf.mxu0
    %v465 = vadd.f32 %v365, %v464
    %466 = vdwg.mxu0
    %467 = vmatpush.msra.mxu0 0.0
    %468 = vmatpush.msra.mxu0 0.0
    %469 = vmatpush.msra.mxu0 0.0
    %470 = vmatpush.msra.mxu0 0.0
    %471 = vmatpush.msra.mxu0 0.0
    %472 = vmatpush.msra.mxu0 0.0
    %473 = vmatpush.msra.mxu0 0.0
    %474 = vmatpush.msra.mxu0 %v342
    %475 = vmatpush.msra.mxu0 %v325
    %476 = vmatpush.msra.mxu0 %v308
    %477 = vmatpush.msra.mxu0 %v291
    %478 = vmatpush.msra.mxu0 %v65
    %479 = vmatpush.msra.mxu0 %v274
    %480 = vmatpush.msra.mxu0 %v257
    %481 = vmatpush.msra.mxu0 %v240
    %482 = vmatpush.msra.mxu0 %v223
    %483 = vmatmul.f32.gmra.mxu0 %v369
    %v484 = vpop.f32.mrf.mxu0
    %v485 = vadd.f32 %v350, %v484
    %486 = vmatmul.f32.gmra.mxu0 %v372
    %v487 = vpop.f32.mrf.mxu0
    %v488 = vadd.f32 %v355, %v487
    %489 = vmatmul.f32.gmra.mxu0 %v375
    %v490 = vpop.f32.mrf.mxu0
    %v491 = vadd.f32 %v360, %v490
    %492 = vmatmul.f32.gmra.mxu0 %v378
    %v493 = vpop.f32.mrf.mxu0
    %v494 = vadd.f32 %v365, %v493
    %495 = vdwg.mxu0
    %v496 = vld [vmem:[%s4] sm:$0xff]
    %v497 = vld [vmem:[%s4 + $0x8] sm:$0xff]
    %v498 = vld [vmem:[%s4 + $0x10] sm:$0xff]
    %v499 = vld [vmem:[%s4 + $0x18] sm:$0xff]
    %v500 = vld [vmem:[%s4 + $0x20] sm:$0xff]
    %v501 = vld [vmem:[%s4 + $0x28] sm:$0xff]
    %v502 = vld [vmem:[%s4 + $0x30] sm:$0xff]
    %v503 = vld [vmem:[%s4 + $0x38] sm:$0xff]
    %v504 = vld [vmem:[%s4 + $0x40] sm:$0xff]
    %v505 = vld [vmem:[%s4 + $0x48] sm:$0xff]
    %v506 = vld [vmem:[%s4 + $0x50] sm:$0xff]
    %v507 = vld [vmem:[%s4 + $0x58] sm:$0xff]
    %508 = vrot.lane.b32.xlu0 %v398, 17
    %v509 = vpop.permute.xlu0 %508
    %510 = vrot.lane.b32.xlu0 %v401, 17
    %v511 = vpop.permute.xlu0 %510
    %512 = vrot.lane.b32.xlu0 %v404, 17
    %v513 = vpop.permute.xlu0 %512
    %514 = vrot.lane.b32.xlu0 %v407, 17
    %v515 = vpop.permute.xlu0 %514
    %516 = vrot.lane.b32.xlu0 %v427, 17
    %v517 = vpop.permute.xlu0 %516
    %518 = vrot.lane.b32.xlu0 %v430, 17
    %v519 = vpop.permute.xlu0 %518
    %520 = vrot.lane.b32.xlu0 %v433, 17
    %v521 = vpop.permute.xlu0 %520
    %522 = vrot.lane.b32.xlu0 %v436, 17
    %v523 = vpop.permute.xlu0 %522
    %524 = vrot.lane.b32.xlu0 %v456, 17
    %v525 = vpop.permute.xlu0 %524
    %526 = vrot.lane.b32.xlu0 %v459, 17
    %v527 = vpop.permute.xlu0 %526
    %528 = vrot.lane.b32.xlu0 %v462, 17
    %v529 = vpop.permute.xlu0 %528
    %530 = vrot.lane.b32.xlu0 %v465, 17
    %v531 = vpop.permute.xlu0 %530
    %532 = vrot.lane.b32.xlu0 %v485, 17
    %v533 = vpop.permute.xlu0 %532
    %534 = vrot.lane.b32.xlu0 %v488, 17
    %v535 = vpop.permute.xlu0 %534
    %536 = vrot.lane.b32.xlu0 %v491, 17
    %v537 = vpop.permute.xlu0 %536
    %538 = vrot.lane.b32.xlu0 %v494, 17
    %v539 = vpop.permute.xlu0 %538
    %v540 = vsel %vm215, %v525, %v533
    %v541 = vsel %vm215, %v527, %v535
    %v542 = vsel %vm215, %v529, %v537
    %v543 = vsel %vm215, %v531, %v539
    %v544 = vsel %vm215, %v517, %v525
    %v545 = vsel %vm215, %v519, %v527
    %v546 = vsel %vm215, %v521, %v529
    %v547 = vsel %vm215, %v523, %v531
    %v548 = vsel %vm215, %v509, %v517
    %v549 = vsel %vm215, %v511, %v519
    %v550 = vsel %vm215, %v513, %v521
    %v551 = vsel %vm215, %v515, %v523
    %v552 = vsel %vm215, %v533, %v509
    %v553 = vsel %vm215, %v535, %v511
    %v554 = vsel %vm215, %v537, %v513
    %v555 = vsel %vm215, %v539, %v515
    %v556 = vmul.f32 %v552, %v66
    %v557 = vmul.f32 %v548, %v67
    %v558 = vmul.f32 %v544, %v68
    %v559 = vmul.f32 %v540, %v69
    %v560 = vmul.f32 %v553, %v70
    %v561 = vmul.f32 %v549, %v71
    %v562 = vmul.f32 %v545, %v72
    %v563 = vmul.f32 %v541, %v73
    %v564 = vmul.f32 %v554, %v74
    %v565 = vmul.f32 %v550, %v75
    %v566 = vmul.f32 %v546, %v76
    %v567 = vmul.f32 %v542, %v77
    %v568 = vmul.f32 %v555, %v78
    %v569 = vmul.f32 %v551, %v79
    %v570 = vmul.f32 %v547, %v80
    %v571 = vmul.f32 %v543, %v81
    %572 = vrot.lane.b32.xlu0 %v398, 16
    %v573 = vpop.permute.xlu0 %572
    %574 = vrot.lane.b32.xlu0 %v401, 16
    %v575 = vpop.permute.xlu0 %574
    %576 = vrot.lane.b32.xlu0 %v404, 16
    %v577 = vpop.permute.xlu0 %576
    %578 = vrot.lane.b32.xlu0 %v407, 16
    %v579 = vpop.permute.xlu0 %578
    %580 = vrot.lane.b32.xlu0 %v427, 16
    %v581 = vpop.permute.xlu0 %580
    %582 = vrot.lane.b32.xlu0 %v430, 16
    %v583 = vpop.permute.xlu0 %582
    %584 = vrot.lane.b32.xlu0 %v433, 16
    %v585 = vpop.permute.xlu0 %584
    %586 = vrot.lane.b32.xlu0 %v436, 16
    %v587 = vpop.permute.xlu0 %586
    %588 = vrot.lane.b32.xlu0 %v456, 16
    %v589 = vpop.permute.xlu0 %588
    %590 = vrot.lane.b32.xlu0 %v459, 16
    %v591 = vpop.permute.xlu0 %590
    %592 = vrot.lane.b32.xlu0 %v462, 16
    %v593 = vpop.permute.xlu0 %592
    %594 = vrot.lane.b32.xlu0 %v465, 16
    %v595 = vpop.permute.xlu0 %594
    %596 = vrot.lane.b32.xlu0 %v485, 16
    %v597 = vpop.permute.xlu0 %596
    %598 = vrot.lane.b32.xlu0 %v488, 16
    %v599 = vpop.permute.xlu0 %598
    %600 = vrot.lane.b32.xlu0 %v491, 16
    %v601 = vpop.permute.xlu0 %600
    %602 = vrot.lane.b32.xlu0 %v494, 16
    %v603 = vpop.permute.xlu0 %602
    %v604 = vsel %vm232, %v589, %v597
    %v605 = vsel %vm232, %v591, %v599
    %v606 = vsel %vm232, %v593, %v601
    %v607 = vsel %vm232, %v595, %v603
    %v608 = vsel %vm232, %v581, %v589
    %v609 = vsel %vm232, %v583, %v591
    %v610 = vsel %vm232, %v585, %v593
    %v611 = vsel %vm232, %v587, %v595
    %v612 = vsel %vm232, %v573, %v581
    %v613 = vsel %vm232, %v575, %v583
    %v614 = vsel %vm232, %v577, %v585
    %v615 = vsel %vm232, %v579, %v587
    %v616 = vsel %vm232, %v597, %v573
    %v617 = vsel %vm232, %v599, %v575
    %v618 = vsel %vm232, %v601, %v577
    %v619 = vsel %vm232, %v603, %v579
    %v620 = vmul.f32 %v616, %v83
    %v621 = vmul.f32 %v612, %v84
    %v622 = vmul.f32 %v608, %v85
    %v623 = vmul.f32 %v604, %v86
    %v624 = vmul.f32 %v617, %v87
    %v625 = vmul.f32 %v613, %v88
    %v626 = vmul.f32 %v609, %v89
    %v627 = vmul.f32 %v605, %v90
    %v628 = vmul.f32 %v618, %v91
    %v629 = vmul.f32 %v614, %v92
    %v630 = vmul.f32 %v610, %v93
    %v631 = vmul.f32 %v606, %v94
    %v632 = vmul.f32 %v619, %v95
    %v633 = vmul.f32 %v615, %v96
    %v634 = vmul.f32 %v611, %v97
    %v635 = vmul.f32 %v607, %v98
    %636 = vrot.lane.b32.xlu0 %v398, 15
    %v637 = vpop.permute.xlu0 %636
    %638 = vrot.lane.b32.xlu0 %v401, 15
    %v639 = vpop.permute.xlu0 %638
    %640 = vrot.lane.b32.xlu0 %v404, 15
    %v641 = vpop.permute.xlu0 %640
    %642 = vrot.lane.b32.xlu0 %v407, 15
    %v643 = vpop.permute.xlu0 %642
    %644 = vrot.lane.b32.xlu0 %v427, 15
    %v645 = vpop.permute.xlu0 %644
    %646 = vrot.lane.b32.xlu0 %v430, 15
    %v647 = vpop.permute.xlu0 %646
    %648 = vrot.lane.b32.xlu0 %v433, 15
    %v649 = vpop.permute.xlu0 %648
    %650 = vrot.lane.b32.xlu0 %v436, 15
    %v651 = vpop.permute.xlu0 %650
    %652 = vrot.lane.b32.xlu0 %v456, 15
    %v653 = vpop.permute.xlu0 %652
    %654 = vrot.lane.b32.xlu0 %v459, 15
    %v655 = vpop.permute.xlu0 %654
    %656 = vrot.lane.b32.xlu0 %v462, 15
    %v657 = vpop.permute.xlu0 %656
    %658 = vrot.lane.b32.xlu0 %v465, 15
    %v659 = vpop.permute.xlu0 %658
    %660 = vrot.lane.b32.xlu0 %v485, 15
    %v661 = vpop.permute.xlu0 %660
    %662 = vrot.lane.b32.xlu0 %v488, 15
    %v663 = vpop.permute.xlu0 %662
    %664 = vrot.lane.b32.xlu0 %v491, 15
    %v665 = vpop.permute.xlu0 %664
    %666 = vrot.lane.b32.xlu0 %v494, 15
    %v667 = vpop.permute.xlu0 %666
    %v668 = vsel %vm249, %v653, %v661
    %v669 = vsel %vm249, %v655, %v663
    %v670 = vsel %vm249, %v657, %v665
    %v671 = vsel %vm249, %v659, %v667
    %v672 = vsel %vm249, %v645, %v653
    %v673 = vsel %vm249, %v647, %v655
    %v674 = vsel %vm249, %v649, %v657
    %v675 = vsel %vm249, %v651, %v659
    %v676 = vsel %vm249, %v637, %v645
    %v677 = vsel %vm249, %v639, %v647
    %v678 = vsel %vm249, %v641, %v649
    %v679 = vsel %vm249, %v643, %v651
    %v680 = vsel %vm249, %v661, %v637
    %v681 = vsel %vm249, %v663, %v639
    %v682 = vsel %vm249, %v665, %v641
    %v683 = vsel %vm249, %v667, %v643
    %v684 = vmul.f32 %v680, %v100
    %v685 = vmul.f32 %v676, %v101
    %v686 = vmul.f32 %v672, %v102
    %v687 = vmul.f32 %v668, %v103
    %v688 = vmul.f32 %v681, %v104
    %v689 = vmul.f32 %v677, %v105
    %v690 = vmul.f32 %v673, %v106
    %v691 = vmul.f32 %v669, %v107
    %v692 = vmul.f32 %v682, %v108
    %v693 = vmul.f32 %v678, %v109
    %v694 = vmul.f32 %v674, %v110
    %v695 = vmul.f32 %v670, %v111
    %v696 = vmul.f32 %v683, %v112
    %v697 = vmul.f32 %v679, %v113
    %v698 = vmul.f32 %v675, %v114
    %v699 = vmul.f32 %v671, %v115
    %700 = vrot.lane.b32.xlu0 %v398, 1
    %v701 = vpop.permute.xlu0 %700
    %702 = vrot.lane.b32.xlu0 %v401, 1
    %v703 = vpop.permute.xlu0 %702
    %704 = vrot.lane.b32.xlu0 %v404, 1
    %v705 = vpop.permute.xlu0 %704
    %706 = vrot.lane.b32.xlu0 %v407, 1
    %v707 = vpop.permute.xlu0 %706
    %708 = vrot.lane.b32.xlu0 %v427, 1
    %v709 = vpop.permute.xlu0 %708
    %710 = vrot.lane.b32.xlu0 %v430, 1
    %v711 = vpop.permute.xlu0 %710
    %712 = vrot.lane.b32.xlu0 %v433, 1
    %v713 = vpop.permute.xlu0 %712
    %714 = vrot.lane.b32.xlu0 %v436, 1
    %v715 = vpop.permute.xlu0 %714
    %716 = vrot.lane.b32.xlu0 %v456, 1
    %v717 = vpop.permute.xlu0 %716
    %718 = vrot.lane.b32.xlu0 %v459, 1
    %v719 = vpop.permute.xlu0 %718
    %720 = vrot.lane.b32.xlu0 %v462, 1
    %v721 = vpop.permute.xlu0 %720
    %722 = vrot.lane.b32.xlu0 %v465, 1
    %v723 = vpop.permute.xlu0 %722
    %724 = vrot.lane.b32.xlu0 %v485, 1
    %v725 = vpop.permute.xlu0 %724
    %726 = vrot.lane.b32.xlu0 %v488, 1
    %v727 = vpop.permute.xlu0 %726
    %728 = vrot.lane.b32.xlu0 %v491, 1
    %v729 = vpop.permute.xlu0 %728
    %730 = vrot.lane.b32.xlu0 %v494, 1
    %v731 = vpop.permute.xlu0 %730
    %v732 = vsel %vm266, %v717, %v725
    %v733 = vsel %vm266, %v719, %v727
    %v734 = vsel %vm266, %v721, %v729
    %v735 = vsel %vm266, %v723, %v731
    %v736 = vsel %vm266, %v709, %v717
    %v737 = vsel %vm266, %v711, %v719
    %v738 = vsel %vm266, %v713, %v721
    %v739 = vsel %vm266, %v715, %v723
    %v740 = vsel %vm266, %v701, %v709
    %v741 = vsel %vm266, %v703, %v711
    %v742 = vsel %vm266, %v705, %v713
    %v743 = vsel %vm266, %v707, %v715
    %v744 = vsel %vm266, %v725, %v701
    %v745 = vsel %vm266, %v727, %v703
    %v746 = vsel %vm266, %v729, %v705
    %v747 = vsel %vm266, %v731, %v707
    %v748 = vmul.f32 %v744, %v117
    %v749 = vmul.f32 %v740, %v118
    %v750 = vmul.f32 %v736, %v119
    %v751 = vmul.f32 %v732, %v120
    %v752 = vmul.f32 %v745, %v121
    %v753 = vmul.f32 %v741, %v122
    %v754 = vmul.f32 %v737, %v123
    %v755 = vmul.f32 %v733, %v124
    %v756 = vmul.f32 %v746, %v125
    %v757 = vmul.f32 %v742, %v126
    %v758 = vmul.f32 %v738, %v127
    %v759 = vmul.f32 %v734, %v128
    %v760 = vmul.f32 %v747, %v129
    %v761 = vmul.f32 %v743, %v130
    %v762 = vmul.f32 %v739, %v131
    %v763 = vmul.f32 %v735, %v132
    %764 = vrot.lane.b32.xlu0 %v398, 127
    %v765 = vpop.permute.xlu0 %764
    %766 = vrot.lane.b32.xlu0 %v401, 127
    %v767 = vpop.permute.xlu0 %766
    %768 = vrot.lane.b32.xlu0 %v404, 127
    %v769 = vpop.permute.xlu0 %768
    %770 = vrot.lane.b32.xlu0 %v407, 127
    %v771 = vpop.permute.xlu0 %770
    %772 = vrot.lane.b32.xlu0 %v427, 127
    %v773 = vpop.permute.xlu0 %772
    %774 = vrot.lane.b32.xlu0 %v430, 127
    %v775 = vpop.permute.xlu0 %774
    %776 = vrot.lane.b32.xlu0 %v433, 127
    %v777 = vpop.permute.xlu0 %776
    %778 = vrot.lane.b32.xlu0 %v436, 127
    %v779 = vpop.permute.xlu0 %778
    %780 = vrot.lane.b32.xlu0 %v456, 127
    %v781 = vpop.permute.xlu0 %780
    %782 = vrot.lane.b32.xlu0 %v459, 127
    %v783 = vpop.permute.xlu0 %782
    %784 = vrot.lane.b32.xlu0 %v462, 127
    %v785 = vpop.permute.xlu0 %784
    %786 = vrot.lane.b32.xlu0 %v465, 127
    %v787 = vpop.permute.xlu0 %786
    %788 = vrot.lane.b32.xlu0 %v485, 127
    %v789 = vpop.permute.xlu0 %788
    %790 = vrot.lane.b32.xlu0 %v488, 127
    %v791 = vpop.permute.xlu0 %790
    %792 = vrot.lane.b32.xlu0 %v491, 127
    %v793 = vpop.permute.xlu0 %792
    %794 = vrot.lane.b32.xlu0 %v494, 127
    %v795 = vpop.permute.xlu0 %794
    %v796 = vsel %vm283, %v781, %v789
    %v797 = vsel %vm283, %v783, %v791
    %v798 = vsel %vm283, %v785, %v793
    %v799 = vsel %vm283, %v787, %v795
    %v800 = vsel %vm283, %v773, %v781
    %v801 = vsel %vm283, %v775, %v783
    %v802 = vsel %vm283, %v777, %v785
    %v803 = vsel %vm283, %v779, %v787
    %v804 = vsel %vm283, %v765, %v773
    %v805 = vsel %vm283, %v767, %v775
    %v806 = vsel %vm283, %v769, %v777
    %v807 = vsel %vm283, %v771, %v779
    %v808 = vsel %vm283, %v789, %v765
    %v809 = vsel %vm283, %v791, %v767
    %v810 = vsel %vm283, %v793, %v769
    %v811 = vsel %vm283, %v795, %v771
    %v812 = vmul.f32 %v804, %v134
    %v813 = vmul.f32 %v800, %v135
    %v814 = vmul.f32 %v796, %v136
    %v815 = vmul.f32 %v808, %v137
    %v816 = vmul.f32 %v805, %v138
    %v817 = vmul.f32 %v801, %v139
    %v818 = vmul.f32 %v797, %v140
    %v819 = vmul.f32 %v809, %v141
    %v820 = vmul.f32 %v806, %v142
    %v821 = vmul.f32 %v802, %v143
    %v822 = vmul.f32 %v798, %v144
    %v823 = vmul.f32 %v810, %v145
    %v824 = vmul.f32 %v807, %v146
    %v825 = vmul.f32 %v803, %v147
    %v826 = vmul.f32 %v799, %v148
    %v827 = vmul.f32 %v811, %v149
    %828 = vrot.lane.b32.xlu0 %v398, 113
    %v829 = vpop.permute.xlu0 %828
    %830 = vrot.lane.b32.xlu0 %v401, 113
    %v831 = vpop.permute.xlu0 %830
    %832 = vrot.lane.b32.xlu0 %v404, 113
    %v833 = vpop.permute.xlu0 %832
    %834 = vrot.lane.b32.xlu0 %v407, 113
    %v835 = vpop.permute.xlu0 %834
    %836 = vrot.lane.b32.xlu0 %v427, 113
    %v837 = vpop.permute.xlu0 %836
    %838 = vrot.lane.b32.xlu0 %v430, 113
    %v839 = vpop.permute.xlu0 %838
    %840 = vrot.lane.b32.xlu0 %v433, 113
    %v841 = vpop.permute.xlu0 %840
    %842 = vrot.lane.b32.xlu0 %v436, 113
    %v843 = vpop.permute.xlu0 %842
    %844 = vrot.lane.b32.xlu0 %v456, 113
    %v845 = vpop.permute.xlu0 %844
    %846 = vrot.lane.b32.xlu0 %v459, 113
    %v847 = vpop.permute.xlu0 %846
    %848 = vrot.lane.b32.xlu0 %v462, 113
    %v849 = vpop.permute.xlu0 %848
    %850 = vrot.lane.b32.xlu0 %v465, 113
    %v851 = vpop.permute.xlu0 %850
    %852 = vrot.lane.b32.xlu0 %v485, 113
    %v853 = vpop.permute.xlu0 %852
    %854 = vrot.lane.b32.xlu0 %v488, 113
    %v855 = vpop.permute.xlu0 %854
    %856 = vrot.lane.b32.xlu0 %v491, 113
    %v857 = vpop.permute.xlu0 %856
    %858 = vrot.lane.b32.xlu0 %v494, 113
    %v859 = vpop.permute.xlu0 %858
    %v860 = vsel %vm300, %v845, %v853
    %v861 = vsel %vm300, %v847, %v855
    %v862 = vsel %vm300, %v849, %v857
    %v863 = vsel %vm300, %v851, %v859
    %v864 = vsel %vm300, %v837, %v845
    %v865 = vsel %vm300, %v839, %v847
    %v866 = vsel %vm300, %v841, %v849
    %v867 = vsel %vm300, %v843, %v851
    %v868 = vsel %vm300, %v829, %v837
    %v869 = vsel %vm300, %v831, %v839
    %v870 = vsel %vm300, %v833, %v841
    %v871 = vsel %vm300, %v835, %v843
    %v872 = vsel %vm300, %v853, %v829
    %v873 = vsel %vm300, %v855, %v831
    %v874 = vsel %vm300, %v857, %v833
    %v875 = vsel %vm300, %v859, %v835
    %v876 = vmul.f32 %v868, %v151
    %v877 = vmul.f32 %v864, %v152
    %v878 = vmul.f32 %v860, %v153
    %v879 = vmul.f32 %v872, %v154
    %v880 = vmul.f32 %v869, %v155
    %v881 = vmul.f32 %v865, %v156
    %v882 = vmul.f32 %v861, %v157
    %v883 = vmul.f32 %v873, %v158
    %v884 = vmul.f32 %v870, %v159
    %v885 = vmul.f32 %v866, %v160
    %v886 = vmul.f32 %v862, %v161
    %v887 = vmul.f32 %v874, %v162
    %v888 = vmul.f32 %v871, %v163
    %v889 = vmul.f32 %v867, %v164
    %v890 = vmul.f32 %v863, %v165
    %v891 = vmul.f32 %v875, %v166
    %892 = vrot.lane.b32.xlu0 %v398, 112
    %v893 = vpop.permute.xlu0 %892
    %894 = vrot.lane.b32.xlu0 %v401, 112
    %v895 = vpop.permute.xlu0 %894
    %896 = vrot.lane.b32.xlu0 %v404, 112
    %v897 = vpop.permute.xlu0 %896
    %898 = vrot.lane.b32.xlu0 %v407, 112
    %v899 = vpop.permute.xlu0 %898
    %900 = vrot.lane.b32.xlu0 %v427, 112
    %v901 = vpop.permute.xlu0 %900
    %902 = vrot.lane.b32.xlu0 %v430, 112
    %v903 = vpop.permute.xlu0 %902
    %904 = vrot.lane.b32.xlu0 %v433, 112
    %v905 = vpop.permute.xlu0 %904
    %906 = vrot.lane.b32.xlu0 %v436, 112
    %v907 = vpop.permute.xlu0 %906
    %908 = vrot.lane.b32.xlu0 %v456, 112
    %v909 = vpop.permute.xlu0 %908
    %910 = vrot.lane.b32.xlu0 %v459, 112
    %v911 = vpop.permute.xlu0 %910
    %912 = vrot.lane.b32.xlu0 %v462, 112
    %v913 = vpop.permute.xlu0 %912
    %914 = vrot.lane.b32.xlu0 %v465, 112
    %v915 = vpop.permute.xlu0 %914
    %916 = vrot.lane.b32.xlu0 %v485, 112
    %v917 = vpop.permute.xlu0 %916
    %918 = vrot.lane.b32.xlu0 %v488, 112
    %v919 = vpop.permute.xlu0 %918
    %920 = vrot.lane.b32.xlu0 %v491, 112
    %v921 = vpop.permute.xlu0 %920
    %922 = vrot.lane.b32.xlu0 %v494, 112
    %v923 = vpop.permute.xlu0 %922
    %v924 = vsel %vm317, %v909, %v917
    %v925 = vsel %vm317, %v911, %v919
    %v926 = vsel %vm317, %v913, %v921
    %v927 = vsel %vm317, %v915, %v923
    %v928 = vsel %vm317, %v901, %v909
    %v929 = vsel %vm317, %v903, %v911
    %v930 = vsel %vm317, %v905, %v913
    %v931 = vsel %vm317, %v907, %v915
    %v932 = vsel %vm317, %v893, %v901
    %v933 = vsel %vm317, %v895, %v903
    %v934 = vsel %vm317, %v897, %v905
    %v935 = vsel %vm317, %v899, %v907
    %v936 = vsel %vm317, %v917, %v893
    %v937 = vsel %vm317, %v919, %v895
    %v938 = vsel %vm317, %v921, %v897
    %v939 = vsel %vm317, %v923, %v899
    %v940 = vmul.f32 %v932, %v168
    %v941 = vmul.f32 %v928, %v169
    %v942 = vmul.f32 %v924, %v170
    %v943 = vmul.f32 %v936, %v171
    %v944 = vmul.f32 %v933, %v172
    %v945 = vmul.f32 %v929, %v173
    %v946 = vmul.f32 %v925, %v174
    %v947 = vmul.f32 %v937, %v175
    %v948 = vmul.f32 %v934, %v176
    %v949 = vmul.f32 %v930, %v177
    %v950 = vmul.f32 %v926, %v178
    %v951 = vmul.f32 %v938, %v179
    %v952 = vmul.f32 %v935, %v180
    %v953 = vmul.f32 %v931, %v181
    %v954 = vmul.f32 %v927, %v182
    %v955 = vmul.f32 %v939, %v183
    %956 = vrot.lane.b32.xlu0 %v398, 111
    %v957 = vpop.permute.xlu0 %956
    %958 = vrot.lane.b32.xlu0 %v401, 111
    %v959 = vpop.permute.xlu0 %958
    %960 = vrot.lane.b32.xlu0 %v404, 111
    %v961 = vpop.permute.xlu0 %960
    %962 = vrot.lane.b32.xlu0 %v407, 111
    %v963 = vpop.permute.xlu0 %962
    %964 = vrot.lane.b32.xlu0 %v427, 111
    %v965 = vpop.permute.xlu0 %964
    %966 = vrot.lane.b32.xlu0 %v430, 111
    %v967 = vpop.permute.xlu0 %966
    %968 = vrot.lane.b32.xlu0 %v433, 111
    %v969 = vpop.permute.xlu0 %968
    %970 = vrot.lane.b32.xlu0 %v436, 111
    %v971 = vpop.permute.xlu0 %970
    %972 = vrot.lane.b32.xlu0 %v456, 111
    %v973 = vpop.permute.xlu0 %972
    %974 = vrot.lane.b32.xlu0 %v459, 111
    %v975 = vpop.permute.xlu0 %974
    %976 = vrot.lane.b32.xlu0 %v462, 111
    %v977 = vpop.permute.xlu0 %976
    %978 = vrot.lane.b32.xlu0 %v465, 111
    %v979 = vpop.permute.xlu0 %978
    %980 = vrot.lane.b32.xlu0 %v485, 111
    %v981 = vpop.permute.xlu0 %980
    %982 = vrot.lane.b32.xlu0 %v488, 111
    %v983 = vpop.permute.xlu0 %982
    %984 = vrot.lane.b32.xlu0 %v491, 111
    %v985 = vpop.permute.xlu0 %984
    %986 = vrot.lane.b32.xlu0 %v494, 111
    %v987 = vpop.permute.xlu0 %986
    %v988 = vsel %vm334, %v973, %v981
    %v989 = vsel %vm334, %v975, %v983
    %v990 = vsel %vm334, %v977, %v985
    %v991 = vsel %vm334, %v979, %v987
    %v992 = vsel %vm334, %v965, %v973
    %v993 = vsel %vm334, %v967, %v975
    %v994 = vsel %vm334, %v969, %v977
    %v995 = vsel %vm334, %v971, %v979
    %v996 = vsel %vm334, %v957, %v965
    %v997 = vsel %vm334, %v959, %v967
    %v998 = vsel %vm334, %v961, %v969
    %v999 = vsel %vm334, %v963, %v971
    %v1000 = vsel %vm334, %v981, %v957
    %v1001 = vsel %vm334, %v983, %v959
    %v1002 = vsel %vm334, %v985, %v961
    %v1003 = vsel %vm334, %v987, %v963
    %v1004 = vmul.f32 %v996, %v185
    %v1005 = vmul.f32 %v992, %v186
    %v1006 = vmul.f32 %v988, %v187
    %v1007 = vmul.f32 %v1000, %v188
    %v1008 = vmul.f32 %v997, %v189
    %v1009 = vmul.f32 %v993, %v190
    %v1010 = vmul.f32 %v989, %v191
    %v1011 = vmul.f32 %v1001, %v192
    %v1012 = vmul.f32 %v998, %v193
    %v1013 = vmul.f32 %v994, %v194
    %v1014 = vmul.f32 %v990, %v195
    %v1015 = vmul.f32 %v1002, %v196
    %v1016 = vmul.f32 %v999, %v197
    %v1017 = vmul.f32 %v995, %v198
    %v1018 = vmul.f32 %v991, %v199
    %v1019 = vmul.f32 %v1003, %v200
    %v1020 = vld [vmem:[%s5] sm:$0xff]
    %v1021 = vld [vmem:[%s5 + $0x8] sm:$0xff]
    %v1022 = vld [vmem:[%s5 + $0x10] sm:$0xff]
    %v1023 = vld [vmem:[%s5 + $0x18] sm:$0xff]
    %1025 = vset.pattern.permute.xlu0 0
    %1026 = vperm.xlu0 %1025, %v1020
    %v1027 = vpop.permute.xlu0 %1026
    %1030 = vset.pattern.permute.xlu0 0
    %1031 = vperm.xlu0 %1030, %v1021
    %v1032 = vpop.permute.xlu0 %1031
    %1035 = vset.pattern.permute.xlu0 0
    %1036 = vperm.xlu0 %1035, %v1022
    %v1037 = vpop.permute.xlu0 %1036
    %1040 = vset.pattern.permute.xlu0 0
    %1041 = vperm.xlu0 %1040, %v1023
    %v1042 = vpop.permute.xlu0 %1041
    %vm1044 = vcmask 261120
    %v1046 = vsel %vm1044, %v498, 0
    %v1049 = vsel %vm1044, %v501, 0
    %v1052 = vsel %vm1044, %v504, 0
    %v1055 = vsel %vm1044, %v507, 0
    %1057 = vmatpush.msra.mxu0 %v760
    %1058 = vmatpush.msra.mxu0 %v756
    %1059 = vmatpush.msra.mxu0 %v752
    %1060 = vmatpush.msra.mxu0 %v748
    %1061 = vmatpush.msra.mxu0 %v696
    %1062 = vmatpush.msra.mxu0 %v692
    %1063 = vmatpush.msra.mxu0 %v688
    %1064 = vmatpush.msra.mxu0 %v684
    %1065 = vmatpush.msra.mxu0 %v632
    %1066 = vmatpush.msra.mxu0 %v628
    %1067 = vmatpush.msra.mxu0 %v624
    %1068 = vmatpush.msra.mxu0 %v620
    %1069 = vmatpush.msra.mxu0 %v568
    %1070 = vmatpush.msra.mxu0 %v564
    %1071 = vmatpush.msra.mxu0 %v560
    %1072 = vmatpush.msra.mxu0 %v556
    %1073 = vmatmul.f32.gmra.mxu0 %v496
    %v1074 = vpop.f32.mrf.mxu0
    %v1075 = vadd.f32 %v1027, %v1074
    %1076 = vmatmul.f32.gmra.mxu0 %v499
    %v1077 = vpop.f32.mrf.mxu0
    %v1078 = vadd.f32 %v1032, %v1077
    %1079 = vmatmul.f32.gmra.mxu0 %v502
    %v1080 = vpop.f32.mrf.mxu0
    %v1081 = vadd.f32 %v1037, %v1080
    %1082 = vmatmul.f32.gmra.mxu0 %v505
    %v1083 = vpop.f32.mrf.mxu0
    %v1084 = vadd.f32 %v1042, %v1083
    %1085 = vdwg.mxu0
    %1086 = vmatpush.msra.mxu0 %v952
    %1087 = vmatpush.msra.mxu0 %v948
    %1088 = vmatpush.msra.mxu0 %v944
    %1089 = vmatpush.msra.mxu0 %v940
    %1090 = vmatpush.msra.mxu0 %v888
    %1091 = vmatpush.msra.mxu0 %v884
    %1092 = vmatpush.msra.mxu0 %v880
    %1093 = vmatpush.msra.mxu0 %v876
    %1094 = vmatpush.msra.mxu0 %v824
    %1095 = vmatpush.msra.mxu0 %v820
    %1096 = vmatpush.msra.mxu0 %v816
    %1097 = vmatpush.msra.mxu0 %v812
    %1098 = vmatpush.msra.mxu0 %v407
    %1099 = vmatpush.msra.mxu0 %v404
    %1100 = vmatpush.msra.mxu0 %v401
    %1101 = vmatpush.msra.mxu0 %v398
    %1102 = vmatmul.f32.gmra.mxu0 %v497
    %v1103 = vpop.f32.mrf.mxu0
    %v1104 = vadd.f32 %v1075, %v1103
    %1105 = vmatmul.f32.gmra.mxu0 %v500
    %v1106 = vpop.f32.mrf.mxu0
    %v1107 = vadd.f32 %v1078, %v1106
    %1108 = vmatmul.f32.gmra.mxu0 %v503
    %v1109 = vpop.f32.mrf.mxu0
    %v1110 = vadd.f32 %v1081, %v1109
    %1111 = vmatmul.f32.gmra.mxu0 %v506
    %v1112 = vpop.f32.mrf.mxu0
    %v1113 = vadd.f32 %v1084, %v1112
    %1114 = vdwg.mxu0
    %1115 = vmatpush.msra.mxu0 0.0
    %1116 = vmatpush.msra.mxu0 0.0
    %1117 = vmatpush.msra.mxu0 0.0
    %1118 = vmatpush.msra.mxu0 0.0
    %1119 = vmatpush.msra.mxu0 0.0
    %1120 = vmatpush.msra.mxu0 0.0
    %1121 = vmatpush.msra.mxu0 0.0
    %1122 = vmatpush.msra.mxu0 0.0
    %1123 = vmatpush.msra.mxu0 0.0
    %1124 = vmatpush.msra.mxu0 0.0
    %1125 = vmatpush.msra.mxu0 0.0
    %1126 = vmatpush.msra.mxu0 0.0
    %1127 = vmatpush.msra.mxu0 %v1016
    %1128 = vmatpush.msra.mxu0 %v1012
    %1129 = vmatpush.msra.mxu0 %v1008
    %1130 = vmatpush.msra.mxu0 %v1004
    %1131 = vmatmul.f32.gmra.mxu0 %v1046
    %v1132 = vpop.f32.mrf.mxu0
    %v1133 = vadd.f32 %v1104, %v1132
    %1134 = vmatmul.f32.gmra.mxu0 %v1049
    %v1135 = vpop.f32.mrf.mxu0
    %v1136 = vadd.f32 %v1107, %v1135
    %1137 = vmatmul.f32.gmra.mxu0 %v1052
    %v1138 = vpop.f32.mrf.mxu0
    %v1139 = vadd.f32 %v1110, %v1138
    %1140 = vmatmul.f32.gmra.mxu0 %v1055
    %v1141 = vpop.f32.mrf.mxu0
    %v1142 = vadd.f32 %v1113, %v1141
    %1143 = vdwg.mxu0
    %1144 = vmatpush.msra.mxu0 %v761
    %1145 = vmatpush.msra.mxu0 %v757
    %1146 = vmatpush.msra.mxu0 %v753
    %1147 = vmatpush.msra.mxu0 %v749
    %1148 = vmatpush.msra.mxu0 %v697
    %1149 = vmatpush.msra.mxu0 %v693
    %1150 = vmatpush.msra.mxu0 %v689
    %1151 = vmatpush.msra.mxu0 %v685
    %1152 = vmatpush.msra.mxu0 %v633
    %1153 = vmatpush.msra.mxu0 %v629
    %1154 = vmatpush.msra.mxu0 %v625
    %1155 = vmatpush.msra.mxu0 %v621
    %1156 = vmatpush.msra.mxu0 %v569
    %1157 = vmatpush.msra.mxu0 %v565
    %1158 = vmatpush.msra.mxu0 %v561
    %1159 = vmatpush.msra.mxu0 %v557
    %1160 = vmatmul.f32.gmra.mxu0 %v496
    %v1161 = vpop.f32.mrf.mxu0
    %v1162 = vadd.f32 %v1027, %v1161
    %1163 = vmatmul.f32.gmra.mxu0 %v499
    %v1164 = vpop.f32.mrf.mxu0
    %v1165 = vadd.f32 %v1032, %v1164
    %1166 = vmatmul.f32.gmra.mxu0 %v502
    %v1167 = vpop.f32.mrf.mxu0
    %v1168 = vadd.f32 %v1037, %v1167
    %1169 = vmatmul.f32.gmra.mxu0 %v505
    %v1170 = vpop.f32.mrf.mxu0
    %v1171 = vadd.f32 %v1042, %v1170
    %1172 = vdwg.mxu0
    %1173 = vmatpush.msra.mxu0 %v953
    %1174 = vmatpush.msra.mxu0 %v949
    %1175 = vmatpush.msra.mxu0 %v945
    %1176 = vmatpush.msra.mxu0 %v941
    %1177 = vmatpush.msra.mxu0 %v889
    %1178 = vmatpush.msra.mxu0 %v885
    %1179 = vmatpush.msra.mxu0 %v881
    %1180 = vmatpush.msra.mxu0 %v877
    %1181 = vmatpush.msra.mxu0 %v825
    %1182 = vmatpush.msra.mxu0 %v821
    %1183 = vmatpush.msra.mxu0 %v817
    %1184 = vmatpush.msra.mxu0 %v813
    %1185 = vmatpush.msra.mxu0 %v436
    %1186 = vmatpush.msra.mxu0 %v433
    %1187 = vmatpush.msra.mxu0 %v430
    %1188 = vmatpush.msra.mxu0 %v427
    %1189 = vmatmul.f32.gmra.mxu0 %v497
    %v1190 = vpop.f32.mrf.mxu0
    %v1191 = vadd.f32 %v1162, %v1190
    %1192 = vmatmul.f32.gmra.mxu0 %v500
    %v1193 = vpop.f32.mrf.mxu0
    %v1194 = vadd.f32 %v1165, %v1193
    %1195 = vmatmul.f32.gmra.mxu0 %v503
    %v1196 = vpop.f32.mrf.mxu0
    %v1197 = vadd.f32 %v1168, %v1196
    %1198 = vmatmul.f32.gmra.mxu0 %v506
    %v1199 = vpop.f32.mrf.mxu0
    %v1200 = vadd.f32 %v1171, %v1199
    %1201 = vdwg.mxu0
    %1202 = vmatpush.msra.mxu0 0.0
    %1203 = vmatpush.msra.mxu0 0.0
    %1204 = vmatpush.msra.mxu0 0.0
    %1205 = vmatpush.msra.mxu0 0.0
    %1206 = vmatpush.msra.mxu0 0.0
    %1207 = vmatpush.msra.mxu0 0.0
    %1208 = vmatpush.msra.mxu0 0.0
    %1209 = vmatpush.msra.mxu0 0.0
    %1210 = vmatpush.msra.mxu0 0.0
    %1211 = vmatpush.msra.mxu0 0.0
    %1212 = vmatpush.msra.mxu0 0.0
    %1213 = vmatpush.msra.mxu0 0.0
    %1214 = vmatpush.msra.mxu0 %v1017
    %1215 = vmatpush.msra.mxu0 %v1013
    %1216 = vmatpush.msra.mxu0 %v1009
    %1217 = vmatpush.msra.mxu0 %v1005
    %1218 = vmatmul.f32.gmra.mxu0 %v1046
    %v1219 = vpop.f32.mrf.mxu0
    %v1220 = vadd.f32 %v1191, %v1219
    %1221 = vmatmul.f32.gmra.mxu0 %v1049
    %v1222 = vpop.f32.mrf.mxu0
    %v1223 = vadd.f32 %v1194, %v1222
    %1224 = vmatmul.f32.gmra.mxu0 %v1052
    %v1225 = vpop.f32.mrf.mxu0
    %v1226 = vadd.f32 %v1197, %v1225
    %1227 = vmatmul.f32.gmra.mxu0 %v1055
    %v1228 = vpop.f32.mrf.mxu0
    %v1229 = vadd.f32 %v1200, %v1228
    %1230 = vdwg.mxu0
    %1231 = vmatpush.msra.mxu0 %v762
    %1232 = vmatpush.msra.mxu0 %v758
    %1233 = vmatpush.msra.mxu0 %v754
    %1234 = vmatpush.msra.mxu0 %v750
    %1235 = vmatpush.msra.mxu0 %v698
    %1236 = vmatpush.msra.mxu0 %v694
    %1237 = vmatpush.msra.mxu0 %v690
    %1238 = vmatpush.msra.mxu0 %v686
    %1239 = vmatpush.msra.mxu0 %v634
    %1240 = vmatpush.msra.mxu0 %v630
    %1241 = vmatpush.msra.mxu0 %v626
    %1242 = vmatpush.msra.mxu0 %v622
    %1243 = vmatpush.msra.mxu0 %v570
    %1244 = vmatpush.msra.mxu0 %v566
    %1245 = vmatpush.msra.mxu0 %v562
    %1246 = vmatpush.msra.mxu0 %v558
    %1247 = vmatmul.f32.gmra.mxu0 %v496
    %v1248 = vpop.f32.mrf.mxu0
    %v1249 = vadd.f32 %v1027, %v1248
    %1250 = vmatmul.f32.gmra.mxu0 %v499
    %v1251 = vpop.f32.mrf.mxu0
    %v1252 = vadd.f32 %v1032, %v1251
    %1253 = vmatmul.f32.gmra.mxu0 %v502
    %v1254 = vpop.f32.mrf.mxu0
    %v1255 = vadd.f32 %v1037, %v1254
    %1256 = vmatmul.f32.gmra.mxu0 %v505
    %v1257 = vpop.f32.mrf.mxu0
    %v1258 = vadd.f32 %v1042, %v1257
    %1259 = vdwg.mxu0
    %1260 = vmatpush.msra.mxu0 %v954
    %1261 = vmatpush.msra.mxu0 %v950
    %1262 = vmatpush.msra.mxu0 %v946
    %1263 = vmatpush.msra.mxu0 %v942
    %1264 = vmatpush.msra.mxu0 %v890
    %1265 = vmatpush.msra.mxu0 %v886
    %1266 = vmatpush.msra.mxu0 %v882
    %1267 = vmatpush.msra.mxu0 %v878
    %1268 = vmatpush.msra.mxu0 %v826
    %1269 = vmatpush.msra.mxu0 %v822
    %1270 = vmatpush.msra.mxu0 %v818
    %1271 = vmatpush.msra.mxu0 %v814
    %1272 = vmatpush.msra.mxu0 %v465
    %1273 = vmatpush.msra.mxu0 %v462
    %1274 = vmatpush.msra.mxu0 %v459
    %1275 = vmatpush.msra.mxu0 %v456
    %1276 = vmatmul.f32.gmra.mxu0 %v497
    %v1277 = vpop.f32.mrf.mxu0
    %v1278 = vadd.f32 %v1249, %v1277
    %1279 = vmatmul.f32.gmra.mxu0 %v500
    %v1280 = vpop.f32.mrf.mxu0
    %v1281 = vadd.f32 %v1252, %v1280
    %1282 = vmatmul.f32.gmra.mxu0 %v503
    %v1283 = vpop.f32.mrf.mxu0
    %v1284 = vadd.f32 %v1255, %v1283
    %1285 = vmatmul.f32.gmra.mxu0 %v506
    %v1286 = vpop.f32.mrf.mxu0
    %v1287 = vadd.f32 %v1258, %v1286
    %1288 = vdwg.mxu0
    %1289 = vmatpush.msra.mxu0 0.0
    %1290 = vmatpush.msra.mxu0 0.0
    %1291 = vmatpush.msra.mxu0 0.0
    %1292 = vmatpush.msra.mxu0 0.0
    %1293 = vmatpush.msra.mxu0 0.0
    %1294 = vmatpush.msra.mxu0 0.0
    %1295 = vmatpush.msra.mxu0 0.0
    %1296 = vmatpush.msra.mxu0 0.0
    %1297 = vmatpush.msra.mxu0 0.0
    %1298 = vmatpush.msra.mxu0 0.0
    %1299 = vmatpush.msra.mxu0 0.0
    %1300 = vmatpush.msra.mxu0 0.0
    %1301 = vmatpush.msra.mxu0 %v1018
    %1302 = vmatpush.msra.mxu0 %v1014
    %1303 = vmatpush.msra.mxu0 %v1010
    %1304 = vmatpush.msra.mxu0 %v1006
    %1305 = vmatmul.f32.gmra.mxu0 %v1046
    %v1306 = vpop.f32.mrf.mxu0
    %v1307 = vadd.f32 %v1278, %v1306
    %1308 = vmatmul.f32.gmra.mxu0 %v1049
    %v1309 = vpop.f32.mrf.mxu0
    %v1310 = vadd.f32 %v1281, %v1309
    %1311 = vmatmul.f32.gmra.mxu0 %v1052
    %v1312 = vpop.f32.mrf.mxu0
    %v1313 = vadd.f32 %v1284, %v1312
    %1314 = vmatmul.f32.gmra.mxu0 %v1055
    %v1315 = vpop.f32.mrf.mxu0
    %v1316 = vadd.f32 %v1287, %v1315
    %1317 = vdwg.mxu0
    %1318 = vmatpush.msra.mxu0 %v763
    %1319 = vmatpush.msra.mxu0 %v759
    %1320 = vmatpush.msra.mxu0 %v755
    %1321 = vmatpush.msra.mxu0 %v751
    %1322 = vmatpush.msra.mxu0 %v699
    %1323 = vmatpush.msra.mxu0 %v695
    %1324 = vmatpush.msra.mxu0 %v691
    %1325 = vmatpush.msra.mxu0 %v687
    %1326 = vmatpush.msra.mxu0 %v635
    %1327 = vmatpush.msra.mxu0 %v631
    %1328 = vmatpush.msra.mxu0 %v627
    %1329 = vmatpush.msra.mxu0 %v623
    %1330 = vmatpush.msra.mxu0 %v571
    %1331 = vmatpush.msra.mxu0 %v567
    %1332 = vmatpush.msra.mxu0 %v563
    %1333 = vmatpush.msra.mxu0 %v559
    %1334 = vmatmul.f32.gmra.mxu0 %v496
    %v1335 = vpop.f32.mrf.mxu0
    %v1336 = vadd.f32 %v1027, %v1335
    %1337 = vmatmul.f32.gmra.mxu0 %v499
    %v1338 = vpop.f32.mrf.mxu0
    %v1339 = vadd.f32 %v1032, %v1338
    %1340 = vmatmul.f32.gmra.mxu0 %v502
    %v1341 = vpop.f32.mrf.mxu0
    %v1342 = vadd.f32 %v1037, %v1341
    %1343 = vmatmul.f32.gmra.mxu0 %v505
    %v1344 = vpop.f32.mrf.mxu0
    %v1345 = vadd.f32 %v1042, %v1344
    %1346 = vdwg.mxu0
    %1347 = vmatpush.msra.mxu0 %v955
    %1348 = vmatpush.msra.mxu0 %v951
    %1349 = vmatpush.msra.mxu0 %v947
    %1350 = vmatpush.msra.mxu0 %v943
    %1351 = vmatpush.msra.mxu0 %v891
    %1352 = vmatpush.msra.mxu0 %v887
    %1353 = vmatpush.msra.mxu0 %v883
    %1354 = vmatpush.msra.mxu0 %v879
    %1355 = vmatpush.msra.mxu0 %v827
    %1356 = vmatpush.msra.mxu0 %v823
    %1357 = vmatpush.msra.mxu0 %v819
    %1358 = vmatpush.msra.mxu0 %v815
    %1359 = vmatpush.msra.mxu0 %v494
    %1360 = vmatpush.msra.mxu0 %v491
    %1361 = vmatpush.msra.mxu0 %v488
    %1362 = vmatpush.msra.mxu0 %v485
    %1363 = vmatmul.f32.gmra.mxu0 %v497
    %v1364 = vpop.f32.mrf.mxu0
    %v1365 = vadd.f32 %v1336, %v1364
    %1366 = vmatmul.f32.gmra.mxu0 %v500
    %v1367 = vpop.f32.mrf.mxu0
    %v1368 = vadd.f32 %v1339, %v1367
    %1369 = vmatmul.f32.gmra.mxu0 %v503
    %v1370 = vpop.f32.mrf.mxu0
    %v1371 = vadd.f32 %v1342, %v1370
    %1372 = vmatmul.f32.gmra.mxu0 %v506
    %v1373 = vpop.f32.mrf.mxu0
    %v1374 = vadd.f32 %v1345, %v1373
    %1375 = vdwg.mxu0
    %1376 = vmatpush.msra.mxu0 0.0
    %1377 = vmatpush.msra.mxu0 0.0
    %1378 = vmatpush.msra.mxu0 0.0
    %1379 = vmatpush.msra.mxu0 0.0
    %1380 = vmatpush.msra.mxu0 0.0
    %1381 = vmatpush.msra.mxu0 0.0
    %1382 = vmatpush.msra.mxu0 0.0
    %1383 = vmatpush.msra.mxu0 0.0
    %1384 = vmatpush.msra.mxu0 0.0
    %1385 = vmatpush.msra.mxu0 0.0
    %1386 = vmatpush.msra.mxu0 0.0
    %1387 = vmatpush.msra.mxu0 0.0
    %1388 = vmatpush.msra.mxu0 %v1019
    %1389 = vmatpush.msra.mxu0 %v1015
    %1390 = vmatpush.msra.mxu0 %v1011
    %1391 = vmatpush.msra.mxu0 %v1007
    %1392 = vmatmul.f32.gmra.mxu0 %v1046
    %v1393 = vpop.f32.mrf.mxu0
    %v1394 = vadd.f32 %v1365, %v1393
    %1395 = vmatmul.f32.gmra.mxu0 %v1049
    %v1396 = vpop.f32.mrf.mxu0
    %v1397 = vadd.f32 %v1368, %v1396
    %1398 = vmatmul.f32.gmra.mxu0 %v1052
    %v1399 = vpop.f32.mrf.mxu0
    %v1400 = vadd.f32 %v1371, %v1399
    %1401 = vmatmul.f32.gmra.mxu0 %v1055
    %v1402 = vpop.f32.mrf.mxu0
    %v1403 = vadd.f32 %v1374, %v1402
    %1404 = vdwg.mxu0
    %v1405 = vmul.f32 %v1133, 0.5
    %v1406 = vmul.f32 %v1220, 0.5
    %v1407 = vmul.f32 %v1307, 0.5
    %v1408 = vmul.f32 %v1394, 0.5
    %v1409 = vmul.f32 %v1136, 0.5
    %v1410 = vmul.f32 %v1223, 0.5
    %v1411 = vmul.f32 %v1310, 0.5
    %v1412 = vmul.f32 %v1397, 0.5
    %v1413 = vmul.f32 %v1139, 0.5
    %v1414 = vmul.f32 %v1226, 0.5
    %v1415 = vmul.f32 %v1313, 0.5
    %v1416 = vmul.f32 %v1400, 0.5
    %v1417 = vmul.f32 %v1142, 0.5
    %v1418 = vmul.f32 %v1229, 0.5
    %v1419 = vmul.f32 %v1316, 0.5
    %v1420 = vmul.f32 %v1403, 0.5
    %v1421 = vmul.f32 %v1133, 0.044715
    %v1422 = vmul.f32 %v1220, 0.044715
    %v1423 = vmul.f32 %v1307, 0.044715
    %v1424 = vmul.f32 %v1394, 0.044715
    %v1425 = vmul.f32 %v1136, 0.044715
    %v1426 = vmul.f32 %v1223, 0.044715
    %v1427 = vmul.f32 %v1310, 0.044715
    %v1428 = vmul.f32 %v1397, 0.044715
    %v1429 = vmul.f32 %v1139, 0.044715
    %v1430 = vmul.f32 %v1226, 0.044715
    %v1431 = vmul.f32 %v1313, 0.044715
    %v1432 = vmul.f32 %v1400, 0.044715
    %v1433 = vmul.f32 %v1142, 0.044715
    %v1434 = vmul.f32 %v1229, 0.044715
    %v1435 = vmul.f32 %v1316, 0.044715
    %v1436 = vmul.f32 %v1403, 0.044715
    %v1437 = vmul.f32 %v1421, %v1133
    %v1438 = vmul.f32 %v1422, %v1220
    %v1439 = vmul.f32 %v1423, %v1307
    %v1440 = vmul.f32 %v1424, %v1394
    %v1441 = vmul.f32 %v1425, %v1136
    %v1442 = vmul.f32 %v1426, %v1223
    %v1443 = vmul.f32 %v1427, %v1310
    %v1444 = vmul.f32 %v1428, %v1397
    %v1445 = vmul.f32 %v1429, %v1139
    %v1446 = vmul.f32 %v1430, %v1226
    %v1447 = vmul.f32 %v1431, %v1313
    %v1448 = vmul.f32 %v1432, %v1400
    %v1449 = vmul.f32 %v1433, %v1142
    %v1450 = vmul.f32 %v1434, %v1229
    %v1451 = vmul.f32 %v1435, %v1316
    %v1452 = vmul.f32 %v1436, %v1403
    %v1453 = vmul.f32 %v1437, %v1133
    %v1454 = vmul.f32 %v1438, %v1220
    %v1455 = vmul.f32 %v1439, %v1307
    %v1456 = vmul.f32 %v1440, %v1394
    %v1457 = vmul.f32 %v1441, %v1136
    %v1458 = vmul.f32 %v1442, %v1223
    %v1459 = vmul.f32 %v1443, %v1310
    %v1460 = vmul.f32 %v1444, %v1397
    %v1461 = vmul.f32 %v1445, %v1139
    %v1462 = vmul.f32 %v1446, %v1226
    %v1463 = vmul.f32 %v1447, %v1313
    %v1464 = vmul.f32 %v1448, %v1400
    %v1465 = vmul.f32 %v1449, %v1142
    %v1466 = vmul.f32 %v1450, %v1229
    %v1467 = vmul.f32 %v1451, %v1316
    %v1468 = vmul.f32 %v1452, %v1403
    %v1469 = vadd.f32 %v1133, %v1453
    %v1470 = vadd.f32 %v1220, %v1454
    %v1471 = vadd.f32 %v1307, %v1455
    %v1472 = vadd.f32 %v1394, %v1456
    %v1473 = vadd.f32 %v1136, %v1457
    %v1474 = vadd.f32 %v1223, %v1458
    %v1475 = vadd.f32 %v1310, %v1459
    %v1476 = vadd.f32 %v1397, %v1460
    %v1477 = vadd.f32 %v1139, %v1461
    %v1478 = vadd.f32 %v1226, %v1462
    %v1479 = vadd.f32 %v1313, %v1463
    %v1480 = vadd.f32 %v1400, %v1464
    %v1481 = vadd.f32 %v1142, %v1465
    %v1482 = vadd.f32 %v1229, %v1466
    %v1483 = vadd.f32 %v1316, %v1467
    %v1484 = vadd.f32 %v1403, %v1468
    %v1485 = vmul.f32 %v1469, 0.7978846
    %v1486 = vmul.f32 %v1470, 0.7978846
    %v1487 = vmul.f32 %v1471, 0.7978846
    %v1488 = vmul.f32 %v1472, 0.7978846
    %v1489 = vmul.f32 %v1473, 0.7978846
    %v1490 = vmul.f32 %v1474, 0.7978846
    %v1491 = vmul.f32 %v1475, 0.7978846
    %v1492 = vmul.f32 %v1476, 0.7978846
    %v1493 = vmul.f32 %v1477, 0.7978846
    %v1494 = vmul.f32 %v1478, 0.7978846
    %v1495 = vmul.f32 %v1479, 0.7978846
    %v1496 = vmul.f32 %v1480, 0.7978846
    %v1497 = vmul.f32 %v1481, 0.7978846
    %v1498 = vmul.f32 %v1482, 0.7978846
    %v1499 = vmul.f32 %v1483, 0.7978846
    %v1500 = vmul.f32 %v1484, 0.7978846
    %v1501 = vtanh.pop %v1485
    %v1502 = vtanh.pop %v1486
    %v1503 = vtanh.pop %v1487
    %v1504 = vtanh.pop %v1488
    %v1505 = vtanh.pop %v1489
    %v1506 = vtanh.pop %v1490
    %v1507 = vtanh.pop %v1491
    %v1508 = vtanh.pop %v1492
    %v1509 = vtanh.pop %v1493
    %v1510 = vtanh.pop %v1494
    %v1511 = vtanh.pop %v1495
    %v1512 = vtanh.pop %v1496
    %v1513 = vtanh.pop %v1497
    %v1514 = vtanh.pop %v1498
    %v1515 = vtanh.pop %v1499
    %v1516 = vtanh.pop %v1500
    %v1517 = vadd.f32 %v1501, 1.0
    %v1518 = vadd.f32 %v1502, 1.0
    %v1519 = vadd.f32 %v1503, 1.0
    %v1520 = vadd.f32 %v1504, 1.0
    %v1521 = vadd.f32 %v1505, 1.0
    %v1522 = vadd.f32 %v1506, 1.0
    %v1523 = vadd.f32 %v1507, 1.0
    %v1524 = vadd.f32 %v1508, 1.0
    %v1525 = vadd.f32 %v1509, 1.0
    %v1526 = vadd.f32 %v1510, 1.0
    %v1527 = vadd.f32 %v1511, 1.0
    %v1528 = vadd.f32 %v1512, 1.0
    %v1529 = vadd.f32 %v1513, 1.0
    %v1530 = vadd.f32 %v1514, 1.0
    %v1531 = vadd.f32 %v1515, 1.0
    %v1532 = vadd.f32 %v1516, 1.0
    %v1533 = vmul.f32 %v1405, %v1517
    %v1534 = vmul.f32 %v1406, %v1518
    %v1535 = vmul.f32 %v1407, %v1519
    %v1536 = vmul.f32 %v1408, %v1520
    %v1537 = vmul.f32 %v1409, %v1521
    %v1538 = vmul.f32 %v1410, %v1522
    %v1539 = vmul.f32 %v1411, %v1523
    %v1540 = vmul.f32 %v1412, %v1524
    %v1541 = vmul.f32 %v1413, %v1525
    %v1542 = vmul.f32 %v1414, %v1526
    %v1543 = vmul.f32 %v1415, %v1527
    %v1544 = vmul.f32 %v1416, %v1528
    %v1545 = vmul.f32 %v1417, %v1529
    %v1546 = vmul.f32 %v1418, %v1530
    %v1547 = vmul.f32 %v1419, %v1531
    %v1548 = vmul.f32 %v1420, %v1532
    %v1549 = vld [vmem:[%s6] sm:$0xff]
    %v1550 = vld [vmem:[%s6 + $0x8] sm:$0xff]
    %v1551 = vld [vmem:[%s6 + $0x10] sm:$0xff]
    %v1552 = vld [vmem:[%s6 + $0x18] sm:$0xff]
    %v1553 = vld [vmem:[%s6 + $0x20] sm:$0xff]
    %v1554 = vld [vmem:[%s6 + $0x28] sm:$0xff]
    %v1555 = vld [vmem:[%s6 + $0x30] sm:$0xff]
    %v1556 = vld [vmem:[%s6 + $0x38] sm:$0xff]
    %v1557 = vld [vmem:[%s6 + $0x40] sm:$0xff]
    %v1558 = vld [vmem:[%s6 + $0x48] sm:$0xff]
    %v1559 = vld [vmem:[%s6 + $0x50] sm:$0xff]
    %v1560 = vld [vmem:[%s6 + $0x58] sm:$0xff]
    %v1561 = vld [vmem:[%s6 + $0x60] sm:$0xff]
    %v1562 = vld [vmem:[%s6 + $0x68] sm:$0xff]
    %v1563 = vld [vmem:[%s6 + $0x70] sm:$0xff]
    %v1564 = vld [vmem:[%s6 + $0x78] sm:$0xff]
    %v1565 = vld [vmem:[%s6 + $0x80] sm:$0xff]
    %v1566 = vld [vmem:[%s6 + $0x88] sm:$0xff]
    %v1567 = vld [vmem:[%s6 + $0x90] sm:$0xff]
    %v1568 = vld [vmem:[%s6 + $0x98] sm:$0xff]
    %v1569 = vld [vmem:[%s6 + $0xa0] sm:$0xff]
    %v1570 = vld [vmem:[%s6 + $0xa8] sm:$0xff]
    %v1571 = vld [vmem:[%s6 + $0xb0] sm:$0xff]
    %v1572 = vld [vmem:[%s6 + $0xb8] sm:$0xff]
    %v1573 = vld [vmem:[%s6 + $0xc0] sm:$0xff]
    %v1574 = vld [vmem:[%s6 + $0xc8] sm:$0xff]
    %v1575 = vld [vmem:[%s6 + $0xd0] sm:$0xff]
    %v1576 = vld [vmem:[%s6 + $0xd8] sm:$0xff]
    %v1577 = vld [vmem:[%s6 + $0xe0] sm:$0xff]
    %v1578 = vld [vmem:[%s6 + $0xe8] sm:$0xff]
    %v1579 = vld [vmem:[%s6 + $0xf0] sm:$0xff]
    %v1580 = vld [vmem:[%s6 + $0xf8] sm:$0xff]
    %v1581 = vld [vmem:[%s7] sm:$0x1]
    %v1583 = vperm.slane %v1581, 0
    %1585 = vmatpush.msra.mxu0 %v1564
    %1586 = vmatpush.msra.mxu0 %v1563
    %1587 = vmatpush.msra.mxu0 %v1562
    %1588 = vmatpush.msra.mxu0 %v1561
    %1589 = vmatpush.msra.mxu0 %v1560
    %1590 = vmatpush.msra.mxu0 %v1559
    %1591 = vmatpush.msra.mxu0 %v1558
    %1592 = vmatpush.msra.mxu0 %v1557
    %1593 = vmatpush.msra.mxu0 %v1556
    %1594 = vmatpush.msra.mxu0 %v1555
    %1595 = vmatpush.msra.mxu0 %v1554
    %1596 = vmatpush.msra.mxu0 %v1553
    %1597 = vmatpush.msra.mxu0 %v1552
    %1598 = vmatpush.msra.mxu0 %v1551
    %1599 = vmatpush.msra.mxu0 %v1550
    %1600 = vmatpush.msra.mxu0 %v1549
    %1601 = vmatmul.f32.gmra.mxu0 %v1533
    %v1602 = vpop.f32.mrf.mxu0
    %v1603 = vadd.f32 %v1583, %v1602
    %1604 = vmatmul.f32.gmra.mxu0 %v1537
    %v1605 = vpop.f32.mrf.mxu0
    %v1606 = vadd.f32 %v1583, %v1605
    %1607 = vmatmul.f32.gmra.mxu0 %v1541
    %v1608 = vpop.f32.mrf.mxu0
    %v1609 = vadd.f32 %v1583, %v1608
    %1610 = vmatmul.f32.gmra.mxu0 %v1545
    %v1611 = vpop.f32.mrf.mxu0
    %v1612 = vadd.f32 %v1583, %v1611
    %1613 = vmatmul.f32.gmra.mxu0 %v1535
    %v1614 = vpop.f32.mrf.mxu0
    %v1615 = vadd.f32 %v1583, %v1614
    %1616 = vmatmul.f32.gmra.mxu0 %v1539
    %v1617 = vpop.f32.mrf.mxu0
    %v1618 = vadd.f32 %v1583, %v1617
    %1619 = vmatmul.f32.gmra.mxu0 %v1543
    %v1620 = vpop.f32.mrf.mxu0
    %v1621 = vadd.f32 %v1583, %v1620
    %1622 = vmatmul.f32.gmra.mxu0 %v1547
    %v1623 = vpop.f32.mrf.mxu0
    %v1624 = vadd.f32 %v1583, %v1623
    %1625 = vdwg.mxu0
    %1626 = vmatpush.msra.mxu0 %v1580
    %1627 = vmatpush.msra.mxu0 %v1579
    %1628 = vmatpush.msra.mxu0 %v1578
    %1629 = vmatpush.msra.mxu0 %v1577
    %1630 = vmatpush.msra.mxu0 %v1576
    %1631 = vmatpush.msra.mxu0 %v1575
    %1632 = vmatpush.msra.mxu0 %v1574
    %1633 = vmatpush.msra.mxu0 %v1573
    %1634 = vmatpush.msra.mxu0 %v1572
    %1635 = vmatpush.msra.mxu0 %v1571
    %1636 = vmatpush.msra.mxu0 %v1570
    %1637 = vmatpush.msra.mxu0 %v1569
    %1638 = vmatpush.msra.mxu0 %v1568
    %1639 = vmatpush.msra.mxu0 %v1567
    %1640 = vmatpush.msra.mxu0 %v1566
    %1641 = vmatpush.msra.mxu0 %v1565
    %1642 = vmatmul.f32.gmra.mxu0 %v1534
    %v1643 = vpop.f32.mrf.mxu0
    %v1644 = vadd.f32 %v1603, %v1643
    %1645 = vmatmul.f32.gmra.mxu0 %v1538
    %v1646 = vpop.f32.mrf.mxu0
    %v1647 = vadd.f32 %v1606, %v1646
    %1648 = vmatmul.f32.gmra.mxu0 %v1542
    %v1649 = vpop.f32.mrf.mxu0
    %v1650 = vadd.f32 %v1609, %v1649
    %1651 = vmatmul.f32.gmra.mxu0 %v1546
    %v1652 = vpop.f32.mrf.mxu0
    %v1653 = vadd.f32 %v1612, %v1652
    %1654 = vmatmul.f32.gmra.mxu0 %v1536
    %v1655 = vpop.f32.mrf.mxu0
    %v1656 = vadd.f32 %v1615, %v1655
    %1657 = vmatmul.f32.gmra.mxu0 %v1540
    %v1658 = vpop.f32.mrf.mxu0
    %v1659 = vadd.f32 %v1618, %v1658
    %1660 = vmatmul.f32.gmra.mxu0 %v1544
    %v1661 = vpop.f32.mrf.mxu0
    %v1662 = vadd.f32 %v1621, %v1661
    %1663 = vmatmul.f32.gmra.mxu0 %v1548
    %v1664 = vpop.f32.mrf.mxu0
    %v1665 = vadd.f32 %v1624, %v1664
    %1666 = vdwg.mxu0
    %1667 = vst [vmem:[%s8] sm:$0xff] %v1644
    %1668 = vst [vmem:[%s8 + $0x8] sm:$0xff] %v1647
    %1669 = vst [vmem:[%s8 + $0x10] sm:$0xff] %v1650
    %1670 = vst [vmem:[%s8 + $0x18] sm:$0xff] %v1653
    %1671 = vst [vmem:[%s8 + $0x20] sm:$0xff] %v1656
    %1672 = vst [vmem:[%s8 + $0x28] sm:$0xff] %v1659
    %1673 = vst [vmem:[%s8 + $0x30] sm:$0xff] %v1662
    %1674 = vst [vmem:[%s8 + $0x38] sm:$0xff] %v1665
    // Predicated region
    $region42: #{photometric_forward.1} parent=1 // pred_check
      _
    $region43: #{photometric_forward.1} parent=1 // pred_check_branch
      %1676 = sbr.rel (0) target = $region45
    $region44: #{photometric_forward.1} parent=1 // pred_region
      _
    $region45: #{photometric_forward.1} parent=1 // pred_fallthru
      _
    // Predicated region
    $region46: #{photometric_forward.1} parent=1 // pred_check
      _
    $region47: #{photometric_forward.1} parent=1 // pred_check_branch
      %1678 = sbr.rel (0) target = $region49
    $region48: #{photometric_forward.1} parent=1 // pred_region
      _
    $region49: #{photometric_forward.1} parent=1 // pred_fallthru
      _
    %1679 = vsyncpa [#allocation3], 1
    %1680 = vsyncpa [#allocation5], 1

</llo_original>
